<compile_context>
chip_gen: v6e
topology: v6e:2x2x1
jax: 0.10.0
libtpu: 0.0.40
codegen_flags: <defaults>
</compile_context>

<pallas_src>
import math

import jax
import jax.numpy as jnp
from jax.experimental import pallas as pl
from jax.experimental.pallas import tpu as pltpu


def _level_geometry(T, W, H, n):
    kt, kw, kh = (math.ceil(s / n) for s in (T, W, H))
    st, sw, sh = (math.floor(s / n) for s in (T, W, H))
    To = (T - kt) // st + 1
    Wo = (W - kw) // sw + 1
    Ho = (H - kh) // sh + 1
    return (kt, kw, kh), (st, sw, sh), (To, Wo, Ho)


def _choose_c_tile(C, bytes_per_channel, target_block_bytes=8 << 20):
    """Largest channel tile whose input block fits the VMEM budget.

    The tile must either equal C (full dim) or be a multiple of 8 so the
    (1, C_TILE, To) output block satisfies the sublane rule.
    """
    cap = max(1, target_block_bytes // max(1, bytes_per_channel))
    if C <= cap:
        return C
    best = None
    for d in range(1, C + 1):
        if C % d == 0 and d <= cap and (d % 8 == 0 or d == C):
            best = d
    return best if best is not None else C


def _make_fused_kernel(levels, H):
    """levels: list of ((kt,kw,kh),(st,sw,sh),(To,Wo,Ho)) per pyramid level."""

    def kernel(x_ref, *out_refs):
        # x_ref block: (1, C_TILE, T, W*H)   (W*H on lanes, T on sublanes)
        # out_refs[i]: (1, C_TILE, To_i)
        for lvl, o_ref in zip(levels, out_refs):
            (kt, kw, kh), (st, sw, sh), (To, Wo, Ho) = lvl
            inv_spatial = 1.0 / float(Wo * Ho)
            cols = []
            for ti in range(To):
                # Temporal window max: only the needed (C_TILE, kt, W*H) slab is
                # read from the VMEM-resident block; sublane reduction over kt.
                xt = jnp.max(x_ref[0, :, ti * st:ti * st + kt, :], axis=1)  # (C, W*H)
                acc = None
                for wi in range(Wo):
                    # A W-window covers kw full H-rows => one contiguous lane slice.
                    base = wi * sw * H
                    wsl = xt[:, base:base + kw * H]                 # (C, kw*H)
                    rowmax = wsl[:, 0:H]
                    for j in range(1, kw):                          # max over kw rows
                        rowmax = jnp.maximum(rowmax, wsl[:, j * H:(j + 1) * H])
                    for hi in range(Ho):
                        win = rowmax[:, hi * sh:hi * sh + kh]       # (C, kh)
                        m = jnp.max(win, axis=1, keepdims=True)     # (C, 1) window max
                        m = m.astype(jnp.float32)                   # accumulate in f32
                        acc = m if acc is None else acc + m
                cols.append(acc * inv_spatial)                      # mean of maxes
            lvl_out = cols[0] if To == 1 else jnp.concatenate(cols, axis=1)  # (C, To)
            o_ref[0] = lvl_out.astype(o_ref.dtype)

    return kernel


def temporal_pyramid_pool3d(x, out_side, *, target_block_bytes=8 << 20):
    """x: [B, C, T, W, H] (PyTorch NCDHW), any float dtype. Returns [B, C, sum(To), 1, 1]."""
    B, C, T, W, H = x.shape
    for n in out_side:
        if n > min(T, W, H):
            raise ValueError(
                f"out_side entry {n} exceeds min spatial/temporal extent {min(T, W, H)} "
                "(stride would be 0, same failure as PyTorch).")

    WH = W * H
    levels = [_level_geometry(T, W, H, n) for n in out_side]
    itemsize = jnp.dtype(x.dtype).itemsize

    c_tile = _choose_c_tile(C, T * WH * itemsize, target_block_bytes)
    n_c_tiles = C // c_tile
    in_block_bytes = c_tile * T * WH * itemsize
    # Explicit scoped-VMEM limit: double-buffered input block + intermediates,
    # capped below v7x's 64 MiB physical VMEM.
    vmem_limit = int(min(64 << 20, max(32 << 20, 5 * in_block_bytes)))

    # Free, contiguous view — no HBM pass, native dtype preserved.
    x4 = x.reshape(B, C, T, WH)

    kernel = _make_fused_kernel(levels, H)
    out_shapes = tuple(
        jax.ShapeDtypeStruct((B, C, lvl[2][0]), x.dtype) for lvl in levels)
    out_specs = tuple(
        pl.BlockSpec((1, c_tile, lvl[2][0]), lambda b, c: (b, c, 0)) for lvl in levels)

    outs = pl.pallas_call(
        kernel,
        out_shape=out_shapes,
        grid=(B, n_c_tiles),
        in_specs=[pl.BlockSpec((1, c_tile, T, WH), lambda b, c: (b, c, 0, 0))],
        out_specs=out_specs,
        compiler_params=pltpu.CompilerParams(
            dimension_semantics=("parallel", "parallel"),
            vmem_limit_bytes=vmem_limit),
    )(x4)

    out = jnp.concatenate(outs, axis=2)        # [B, C, sum(To)]
    return out[..., None, None]                # [B, C, sum(To), 1, 1]


def _reference_tpp3d(x, out_side):
    """Pure-JAX reference mirroring the PyTorch forward exactly."""
    outs = []
    for n in out_side:
        (kt, kw, kh), (st, sw, sh), (To, Wo, Ho) = _level_geometry(*x.shape[2:], n)
        pooled = jnp.stack(
            [
                jnp.stack(
                    [
                        jnp.stack(
                            [
                                jnp.max(
                                    x[:, :, ti * st:ti * st + kt,
                                          wi * sw:wi * sw + kw,
                                          hi * sh:hi * sh + kh],
                                    axis=(2, 3, 4),
                                )
                                for hi in range(Ho)
                            ],
                            axis=-1,
                        )
                        for wi in range(Wo)
                    ],
                    axis=-1,
                )
                for ti in range(To)
            ],
            axis=2,
        )  # (B, C, To, Wo, Ho)
        outs.append(jnp.mean(pooled, axis=(3, 4)))  # (B, C, To)
    out = jnp.concatenate(outs, axis=2)
    return out[..., None, None]


if __name__ == "__main__":
    # Small shapes consistent with the module's 5D NCDHW input.
    B, C, T, W, H = 2, 4, 8, 16, 16
    out_side = (1, 2, 4)  # TemporalPyramidPool3D(out_side=(1, 2, 4))

    key = jax.random.PRNGKey(0)
    x = jax.random.normal(key, (B, C, T, W, H), dtype=jnp.float32)

    out = jax.block_until_ready(temporal_pyramid_pool3d(x, out_side))
    ref = jax.block_until_ready(_reference_tpp3d(x, out_side))

    assert out.shape == (B, C, sum(out_side), 1, 1), out.shape
    assert out.dtype == x.dtype, out.dtype
    assert jnp.allclose(out, ref, atol=1e-5, rtol=1e-5), float(jnp.max(jnp.abs(out - ref)))

    print("KERNEL_OK")
</pallas_src>

<mosaic_0001>
module attributes {stable_mosaic.version = 11 : i64} {
  func.func @kernel(%arg0: i32, %arg1: i32, %arg2: memref<1x4x8x256xf32, #tpu.memory_space<vmem>>, %arg3: memref<1x4x1xf32, #tpu.memory_space<vmem>>, %arg4: memref<1x4x2xf32, #tpu.memory_space<vmem>>, %arg5: memref<1x4x4xf32, #tpu.memory_space<vmem>>) attributes {dimension_semantics = [#tpu.dimension_semantics<parallel>, #tpu.dimension_semantics<parallel>], iteration_bounds = array<i64: 2, 1>, scalar_prefetch = 0 : i64, scratch_operands = 0 : i64, tpu.core_type = #tpu.core_type<tc>, window_params = [{transform_indices = @transform_0, window_bounds = array<i64: 1, 4, 8, 256>}, {transform_indices = @transform_1, window_bounds = array<i64: 1, 4, 1>}, {transform_indices = @transform_2, window_bounds = array<i64: 1, 4, 2>}, {transform_indices = @transform_3, window_bounds = array<i64: 1, 4, 4>}]} {
    %c0 = arith.constant 0 : index
    %c0_0 = arith.constant 0 : index
    %c0_1 = arith.constant 0 : index
    %c0_2 = arith.constant 0 : index
    %0 = vector.load %arg2[%c0, %c0_0, %c0_1, %c0_2] : memref<1x4x8x256xf32, #tpu.memory_space<vmem>>, vector<1x4x8x256xf32>
    %1 = vector.shape_cast %0 : vector<1x4x8x256xf32> to vector<4x8x256xf32>
    %cst = arith.constant dense<0xFF800000> : vector<4x256xf32>
    %2 = vector.multi_reduction <maximumf>, %1, %cst [1] : vector<4x8x256xf32> to vector<4x256xf32>
    %3 = vector.extract_strided_slice %2 {offsets = [0, 0], sizes = [4, 16], strides = [1, 1]} : vector<4x256xf32> to vector<4x16xf32>
    %4 = vector.extract_strided_slice %2 {offsets = [0, 16], sizes = [4, 16], strides = [1, 1]} : vector<4x256xf32> to vector<4x16xf32>
    %5 = arith.maximumf %3, %4 : vector<4x16xf32>
    %6 = vector.extract_strided_slice %2 {offsets = [0, 32], sizes = [4, 16], strides = [1, 1]} : vector<4x256xf32> to vector<4x16xf32>
    %7 = arith.maximumf %5, %6 : vector<4x16xf32>
    %8 = vector.extract_strided_slice %2 {offsets = [0, 48], sizes = [4, 16], strides = [1, 1]} : vector<4x256xf32> to vector<4x16xf32>
    %9 = arith.maximumf %7, %8 : vector<4x16xf32>
    %10 = vector.extract_strided_slice %2 {offsets = [0, 64], sizes = [4, 16], strides = [1, 1]} : vector<4x256xf32> to vector<4x16xf32>
    %11 = arith.maximumf %9, %10 : vector<4x16xf32>
    %12 = vector.extract_strided_slice %2 {offsets = [0, 80], sizes = [4, 16], strides = [1, 1]} : vector<4x256xf32> to vector<4x16xf32>
    %13 = arith.maximumf %11, %12 : vector<4x16xf32>
    %14 = vector.extract_strided_slice %2 {offsets = [0, 96], sizes = [4, 16], strides = [1, 1]} : vector<4x256xf32> to vector<4x16xf32>
    %15 = arith.maximumf %13, %14 : vector<4x16xf32>
    %16 = vector.extract_strided_slice %2 {offsets = [0, 112], sizes = [4, 16], strides = [1, 1]} : vector<4x256xf32> to vector<4x16xf32>
    %17 = arith.maximumf %15, %16 : vector<4x16xf32>
    %18 = vector.extract_strided_slice %2 {offsets = [0, 128], sizes = [4, 16], strides = [1, 1]} : vector<4x256xf32> to vector<4x16xf32>
    %19 = arith.maximumf %17, %18 : vector<4x16xf32>
    %20 = vector.extract_strided_slice %2 {offsets = [0, 144], sizes = [4, 16], strides = [1, 1]} : vector<4x256xf32> to vector<4x16xf32>
    %21 = arith.maximumf %19, %20 : vector<4x16xf32>
    %22 = vector.extract_strided_slice %2 {offsets = [0, 160], sizes = [4, 16], strides = [1, 1]} : vector<4x256xf32> to vector<4x16xf32>
    %23 = arith.maximumf %21, %22 : vector<4x16xf32>
    %24 = vector.extract_strided_slice %2 {offsets = [0, 176], sizes = [4, 16], strides = [1, 1]} : vector<4x256xf32> to vector<4x16xf32>
    %25 = arith.maximumf %23, %24 : vector<4x16xf32>
    %26 = vector.extract_strided_slice %2 {offsets = [0, 192], sizes = [4, 16], strides = [1, 1]} : vector<4x256xf32> to vector<4x16xf32>
    %27 = arith.maximumf %25, %26 : vector<4x16xf32>
    %28 = vector.extract_strided_slice %2 {offsets = [0, 208], sizes = [4, 16], strides = [1, 1]} : vector<4x256xf32> to vector<4x16xf32>
    %29 = arith.maximumf %27, %28 : vector<4x16xf32>
    %30 = vector.extract_strided_slice %2 {offsets = [0, 224], sizes = [4, 16], strides = [1, 1]} : vector<4x256xf32> to vector<4x16xf32>
    %31 = arith.maximumf %29, %30 : vector<4x16xf32>
    %32 = vector.extract_strided_slice %2 {offsets = [0, 240], sizes = [4, 16], strides = [1, 1]} : vector<4x256xf32> to vector<4x16xf32>
    %33 = arith.maximumf %31, %32 : vector<4x16xf32>
    %cst_3 = arith.constant dense<0xFF800000> : vector<4xf32>
    %34 = vector.multi_reduction <maximumf>, %33, %cst_3 [1] : vector<4x16xf32> to vector<4xf32>
    %35 = vector.shape_cast %34 : vector<4xf32> to vector<4x1xf32>
    %cst_4 = arith.constant 1.000000e+00 : f32
    %36 = vector.broadcast %cst_4 : f32 to vector<4x1xf32>
    %37 = arith.mulf %35, %36 : vector<4x1xf32>
    %c0_5 = arith.constant 0 : index
    %c0_6 = arith.constant 0 : index
    %c0_7 = arith.constant 0 : index
    %38 = vector.load %arg3[%c0_5, %c0_6, %c0_7] : memref<1x4x1xf32, #tpu.memory_space<vmem>>, vector<1x4x1xf32>
    %39 = vector.shape_cast %38 : vector<1x4x1xf32> to vector<4x1xf32>
    %40 = vector.shape_cast %37 : vector<4x1xf32> to vector<1x4x1xf32>
    tpu.vector_store %arg3[%c0_5, %c0_6, %c0_7], %40 {strides = array<i32>} : memref<1x4x1xf32, #tpu.memory_space<vmem>>, vector<1x4x1xf32>,
    %c0_8 = arith.constant 0 : index
    %c0_9 = arith.constant 0 : index
    %c0_10 = arith.constant 0 : index
    %c0_11 = arith.constant 0 : index
    %41 = vector.load %arg2[%c0_8, %c0_9, %c0_10, %c0_11] : memref<1x4x8x256xf32, #tpu.memory_space<vmem>>, vector<1x4x4x256xf32>
    %42 = vector.shape_cast %41 : vector<1x4x4x256xf32> to vector<4x4x256xf32>
    %cst_12 = arith.constant dense<0xFF800000> : vector<4x256xf32>
    %43 = vector.multi_reduction <maximumf>, %42, %cst_12 [1] : vector<4x4x256xf32> to vector<4x256xf32>
    %44 = vector.extract_strided_slice %43 {offsets = [0, 0], sizes = [4, 128], strides = [1, 1]} : vector<4x256xf32> to vector<4x128xf32>
    %45 = vector.extract_strided_slice %44 {offsets = [0, 0], sizes = [4, 16], strides = [1, 1]} : vector<4x128xf32> to vector<4x16xf32>
    %46 = vector.extract_strided_slice %44 {offsets = [0, 16], sizes = [4, 16], strides = [1, 1]} : vector<4x128xf32> to vector<4x16xf32>
    %47 = arith.maximumf %45, %46 : vector<4x16xf32>
    %48 = vector.extract_strided_slice %44 {offsets = [0, 32], sizes = [4, 16], strides = [1, 1]} : vector<4x128xf32> to vector<4x16xf32>
    %49 = arith.maximumf %47, %48 : vector<4x16xf32>
    %50 = vector.extract_strided_slice %44 {offsets = [0, 48], sizes = [4, 16], strides = [1, 1]} : vector<4x128xf32> to vector<4x16xf32>
    %51 = arith.maximumf %49, %50 : vector<4x16xf32>
    %52 = vector.extract_strided_slice %44 {offsets = [0, 64], sizes = [4, 16], strides = [1, 1]} : vector<4x128xf32> to vector<4x16xf32>
    %53 = arith.maximumf %51, %52 : vector<4x16xf32>
    %54 = vector.extract_strided_slice %44 {offsets = [0, 80], sizes = [4, 16], strides = [1, 1]} : vector<4x128xf32> to vector<4x16xf32>
    %55 = arith.maximumf %53, %54 : vector<4x16xf32>
    %56 = vector.extract_strided_slice %44 {offsets = [0, 96], sizes = [4, 16], strides = [1, 1]} : vector<4x128xf32> to vector<4x16xf32>
    %57 = arith.maximumf %55, %56 : vector<4x16xf32>
    %58 = vector.extract_strided_slice %44 {offsets = [0, 112], sizes = [4, 16], strides = [1, 1]} : vector<4x128xf32> to vector<4x16xf32>
    %59 = arith.maximumf %57, %58 : vector<4x16xf32>
    %60 = vector.extract_strided_slice %59 {offsets = [0, 0], sizes = [4, 8], strides = [1, 1]} : vector<4x16xf32> to vector<4x8xf32>
    %cst_13 = arith.constant dense<0xFF800000> : vector<4xf32>
    %61 = vector.multi_reduction <maximumf>, %60, %cst_13 [1] : vector<4x8xf32> to vector<4xf32>
    %62 = vector.shape_cast %61 : vector<4xf32> to vector<4x1xf32>
    %63 = vector.extract_strided_slice %59 {offsets = [0, 8], sizes = [4, 8], strides = [1, 1]} : vector<4x16xf32> to vector<4x8xf32>
    %cst_14 = arith.constant dense<0xFF800000> : vector<4xf32>
    %64 = vector.multi_reduction <maximumf>, %63, %cst_14 [1] : vector<4x8xf32> to vector<4xf32>
    %65 = vector.shape_cast %64 : vector<4xf32> to vector<4x1xf32>
    %66 = arith.addf %62, %65 : vector<4x1xf32>
    %67 = vector.extract_strided_slice %43 {offsets = [0, 128], sizes = [4, 128], strides = [1, 1]} : vector<4x256xf32> to vector<4x128xf32>
    %68 = vector.extract_strided_slice %67 {offsets = [0, 0], sizes = [4, 16], strides = [1, 1]} : vector<4x128xf32> to vector<4x16xf32>
    %69 = vector.extract_strided_slice %67 {offsets = [0, 16], sizes = [4, 16], strides = [1, 1]} : vector<4x128xf32> to vector<4x16xf32>
    %70 = arith.maximumf %68, %69 : vector<4x16xf32>
    %71 = vector.extract_strided_slice %67 {offsets = [0, 32], sizes = [4, 16], strides = [1, 1]} : vector<4x128xf32> to vector<4x16xf32>
    %72 = arith.maximumf %70, %71 : vector<4x16xf32>
    %73 = vector.extract_strided_slice %67 {offsets = [0, 48], sizes = [4, 16], strides = [1, 1]} : vector<4x128xf32> to vector<4x16xf32>
    %74 = arith.maximumf %72, %73 : vector<4x16xf32>
    %75 = vector.extract_strided_slice %67 {offsets = [0, 64], sizes = [4, 16], strides = [1, 1]} : vector<4x128xf32> to vector<4x16xf32>
    %76 = arith.maximumf %74, %75 : vector<4x16xf32>
    %77 = vector.extract_strided_slice %67 {offsets = [0, 80], sizes = [4, 16], strides = [1, 1]} : vector<4x128xf32> to vector<4x16xf32>
    %78 = arith.maximumf %76, %77 : vector<4x16xf32>
    %79 = vector.extract_strided_slice %67 {offsets = [0, 96], sizes = [4, 16], strides = [1, 1]} : vector<4x128xf32> to vector<4x16xf32>
    %80 = arith.maximumf %78, %79 : vector<4x16xf32>
    %81 = vector.extract_strided_slice %67 {offsets = [0, 112], sizes = [4, 16], strides = [1, 1]} : vector<4x128xf32> to vector<4x16xf32>
    %82 = arith.maximumf %80, %81 : vector<4x16xf32>
    %83 = vector.extract_strided_slice %82 {offsets = [0, 0], sizes = [4, 8], strides = [1, 1]} : vector<4x16xf32> to vector<4x8xf32>
    %cst_15 = arith.constant dense<0xFF800000> : vector<4xf32>
    %84 = vector.multi_reduction <maximumf>, %83, %cst_15 [1] : vector<4x8xf32> to vector<4xf32>
    %85 = vector.shape_cast %84 : vector<4xf32> to vector<4x1xf32>
    %86 = arith.addf %66, %85 : vector<4x1xf32>
    %87 = vector.extract_strided_slice %82 {offsets = [0, 8], sizes = [4, 8], strides = [1, 1]} : vector<4x16xf32> to vector<4x8xf32>
    %cst_16 = arith.constant dense<0xFF800000> : vector<4xf32>
    %88 = vector.multi_reduction <maximumf>, %87, %cst_16 [1] : vector<4x8xf32> to vector<4xf32>
    %89 = vector.shape_cast %88 : vector<4xf32> to vector<4x1xf32>
    %90 = arith.addf %86, %89 : vector<4x1xf32>
    %cst_17 = arith.constant 2.500000e-01 : f32
    %91 = vector.broadcast %cst_17 : f32 to vector<4x1xf32>
    %92 = arith.mulf %90, %91 : vector<4x1xf32>
    %c0_18 = arith.constant 0 : index
    %c0_19 = arith.constant 0 : index
    %c4 = arith.constant 4 : index
    %c0_20 = arith.constant 0 : index
    %93 = vector.load %arg2[%c0_18, %c0_19, %c4, %c0_20] : memref<1x4x8x256xf32, #tpu.memory_space<vmem>>, vector<1x4x4x256xf32>
    %94 = vector.shape_cast %93 : vector<1x4x4x256xf32> to vector<4x4x256xf32>
    %cst_21 = arith.constant dense<0xFF800000> : vector<4x256xf32>
    %95 = vector.multi_reduction <maximumf>, %94, %cst_21 [1] : vector<4x4x256xf32> to vector<4x256xf32>
    %96 = vector.extract_strided_slice %95 {offsets = [0, 0], sizes = [4, 128], strides = [1, 1]} : vector<4x256xf32> to vector<4x128xf32>
    %97 = vector.extract_strided_slice %96 {offsets = [0, 0], sizes = [4, 16], strides = [1, 1]} : vector<4x128xf32> to vector<4x16xf32>
    %98 = vector.extract_strided_slice %96 {offsets = [0, 16], sizes = [4, 16], strides = [1, 1]} : vector<4x128xf32> to vector<4x16xf32>
    %99 = arith.maximumf %97, %98 : vector<4x16xf32>
    %100 = vector.extract_strided_slice %96 {offsets = [0, 32], sizes = [4, 16], strides = [1, 1]} : vector<4x128xf32> to vector<4x16xf32>
    %101 = arith.maximumf %99, %100 : vector<4x16xf32>
    %102 = vector.extract_strided_slice %96 {offsets = [0, 48], sizes = [4, 16], strides = [1, 1]} : vector<4x128xf32> to vector<4x16xf32>
    %103 = arith.maximumf %101, %102 : vector<4x16xf32>
    %104 = vector.extract_strided_slice %96 {offsets = [0, 64], sizes = [4, 16], strides = [1, 1]} : vector<4x128xf32> to vector<4x16xf32>
    %105 = arith.maximumf %103, %104 : vector<4x16xf32>
    %106 = vector.extract_strided_slice %96 {offsets = [0, 80], sizes = [4, 16], strides = [1, 1]} : vector<4x128xf32> to vector<4x16xf32>
    %107 = arith.maximumf %105, %106 : vector<4x16xf32>
    %108 = vector.extract_strided_slice %96 {offsets = [0, 96], sizes = [4, 16], strides = [1, 1]} : vector<4x128xf32> to vector<4x16xf32>
    %109 = arith.maximumf %107, %108 : vector<4x16xf32>
    %110 = vector.extract_strided_slice %96 {offsets = [0, 112], sizes = [4, 16], strides = [1, 1]} : vector<4x128xf32> to vector<4x16xf32>
    %111 = arith.maximumf %109, %110 : vector<4x16xf32>
    %112 = vector.extract_strided_slice %111 {offsets = [0, 0], sizes = [4, 8], strides = [1, 1]} : vector<4x16xf32> to vector<4x8xf32>
    %cst_22 = arith.constant dense<0xFF800000> : vector<4xf32>
    %113 = vector.multi_reduction <maximumf>, %112, %cst_22 [1] : vector<4x8xf32> to vector<4xf32>
    %114 = vector.shape_cast %113 : vector<4xf32> to vector<4x1xf32>
    %115 = vector.extract_strided_slice %111 {offsets = [0, 8], sizes = [4, 8], strides = [1, 1]} : vector<4x16xf32> to vector<4x8xf32>
    %cst_23 = arith.constant dense<0xFF800000> : vector<4xf32>
    %116 = vector.multi_reduction <maximumf>, %115, %cst_23 [1] : vector<4x8xf32> to vector<4xf32>
    %117 = vector.shape_cast %116 : vector<4xf32> to vector<4x1xf32>
    %118 = arith.addf %114, %117 : vector<4x1xf32>
    %119 = vector.extract_strided_slice %95 {offsets = [0, 128], sizes = [4, 128], strides = [1, 1]} : vector<4x256xf32> to vector<4x128xf32>
    %120 = vector.extract_strided_slice %119 {offsets = [0, 0], sizes = [4, 16], strides = [1, 1]} : vector<4x128xf32> to vector<4x16xf32>
    %121 = vector.extract_strided_slice %119 {offsets = [0, 16], sizes = [4, 16], strides = [1, 1]} : vector<4x128xf32> to vector<4x16xf32>
    %122 = arith.maximumf %120, %121 : vector<4x16xf32>
    %123 = vector.extract_strided_slice %119 {offsets = [0, 32], sizes = [4, 16], strides = [1, 1]} : vector<4x128xf32> to vector<4x16xf32>
    %124 = arith.maximumf %122, %123 : vector<4x16xf32>
    %125 = vector.extract_strided_slice %119 {offsets = [0, 48], sizes = [4, 16], strides = [1, 1]} : vector<4x128xf32> to vector<4x16xf32>
    %126 = arith.maximumf %124, %125 : vector<4x16xf32>
    %127 = vector.extract_strided_slice %119 {offsets = [0, 64], sizes = [4, 16], strides = [1, 1]} : vector<4x128xf32> to vector<4x16xf32>
    %128 = arith.maximumf %126, %127 : vector<4x16xf32>
    %129 = vector.extract_strided_slice %119 {offsets = [0, 80], sizes = [4, 16], strides = [1, 1]} : vector<4x128xf32> to vector<4x16xf32>
    %130 = arith.maximumf %128, %129 : vector<4x16xf32>
    %131 = vector.extract_strided_slice %119 {offsets = [0, 96], sizes = [4, 16], strides = [1, 1]} : vector<4x128xf32> to vector<4x16xf32>
    %132 = arith.maximumf %130, %131 : vector<4x16xf32>
    %133 = vector.extract_strided_slice %119 {offsets = [0, 112], sizes = [4, 16], strides = [1, 1]} : vector<4x128xf32> to vector<4x16xf32>
    %134 = arith.maximumf %132, %133 : vector<4x16xf32>
    %135 = vector.extract_strided_slice %134 {offsets = [0, 0], sizes = [4, 8], strides = [1, 1]} : vector<4x16xf32> to vector<4x8xf32>
    %cst_24 = arith.constant dense<0xFF800000> : vector<4xf32>
    %136 = vector.multi_reduction <maximumf>, %135, %cst_24 [1] : vector<4x8xf32> to vector<4xf32>
    %137 = vector.shape_cast %136 : vector<4xf32> to vector<4x1xf32>
    %138 = arith.addf %118, %137 : vector<4x1xf32>
    %139 = vector.extract_strided_slice %134 {offsets = [0, 8], sizes = [4, 8], strides = [1, 1]} : vector<4x16xf32> to vector<4x8xf32>
    %cst_25 = arith.constant dense<0xFF800000> : vector<4xf32>
    %140 = vector.multi_reduction <maximumf>, %139, %cst_25 [1] : vector<4x8xf32> to vector<4xf32>
    %141 = vector.shape_cast %140 : vector<4xf32> to vector<4x1xf32>
    %142 = arith.addf %138, %141 : vector<4x1xf32>
    %cst_26 = arith.constant 2.500000e-01 : f32
    %143 = vector.broadcast %cst_26 : f32 to vector<4x1xf32>
    %144 = arith.mulf %142, %143 : vector<4x1xf32>
    %145 = tpu.concatenate %92, %144 in 1 : vector<4x1xf32>, vector<4x1xf32> -> vector<4x2xf32>
    %c0_27 = arith.constant 0 : index
    %c0_28 = arith.constant 0 : index
    %c0_29 = arith.constant 0 : index
    %146 = vector.load %arg4[%c0_27, %c0_28, %c0_29] : memref<1x4x2xf32, #tpu.memory_space<vmem>>, vector<1x4x2xf32>
    %147 = vector.shape_cast %146 : vector<1x4x2xf32> to vector<4x2xf32>
    %148 = vector.shape_cast %145 : vector<4x2xf32> to vector<1x4x2xf32>
    tpu.vector_store %arg4[%c0_27, %c0_28, %c0_29], %148 {strides = array<i32>} : memref<1x4x2xf32, #tpu.memory_space<vmem>>, vector<1x4x2xf32>,
    %c0_30 = arith.constant 0 : index
    %c0_31 = arith.constant 0 : index
    %c0_32 = arith.constant 0 : index
    %c0_33 = arith.constant 0 : index
    %149 = vector.load %arg2[%c0_30, %c0_31, %c0_32, %c0_33] : memref<1x4x8x256xf32, #tpu.memory_space<vmem>>, vector<1x4x2x256xf32>
    %150 = vector.shape_cast %149 : vector<1x4x2x256xf32> to vector<4x2x256xf32>
    %cst_34 = arith.constant dense<0xFF800000> : vector<4x256xf32>
    %151 = vector.multi_reduction <maximumf>, %150, %cst_34 [1] : vector<4x2x256xf32> to vector<4x256xf32>
    %152 = vector.extract_strided_slice %151 {offsets = [0, 0], sizes = [4, 64], strides = [1, 1]} : vector<4x256xf32> to vector<4x64xf32>
    %153 = vector.extract_strided_slice %152 {offsets = [0, 0], sizes = [4, 16], strides = [1, 1]} : vector<4x64xf32> to vector<4x16xf32>
    %154 = vector.extract_strided_slice %152 {offsets = [0, 16], sizes = [4, 16], strides = [1, 1]} : vector<4x64xf32> to vector<4x16xf32>
    %155 = arith.maximumf %153, %154 : vector<4x16xf32>
    %156 = vector.extract_strided_slice %152 {offsets = [0, 32], sizes = [4, 16], strides = [1, 1]} : vector<4x64xf32> to vector<4x16xf32>
    %157 = arith.maximumf %155, %156 : vector<4x16xf32>
    %158 = vector.extract_strided_slice %152 {offsets = [0, 48], sizes = [4, 16], strides = [1, 1]} : vector<4x64xf32> to vector<4x16xf32>
    %159 = arith.maximumf %157, %158 : vector<4x16xf32>
    %160 = vector.extract_strided_slice %159 {offsets = [0, 0], sizes = [4, 4], strides = [1, 1]} : vector<4x16xf32> to vector<4x4xf32>
    %cst_35 = arith.constant dense<0xFF800000> : vector<4xf32>
    %161 = vector.multi_reduction <maximumf>, %160, %cst_35 [1] : vector<4x4xf32> to vector<4xf32>
    %162 = vector.shape_cast %161 : vector<4xf32> to vector<4x1xf32>
    %163 = vector.extract_strided_slice %159 {offsets = [0, 4], sizes = [4, 4], strides = [1, 1]} : vector<4x16xf32> to vector<4x4xf32>
    %cst_36 = arith.constant dense<0xFF800000> : vector<4xf32>
    %164 = vector.multi_reduction <maximumf>, %163, %cst_36 [1] : vector<4x4xf32> to vector<4xf32>
    %165 = vector.shape_cast %164 : vector<4xf32> to vector<4x1xf32>
    %166 = arith.addf %162, %165 : vector<4x1xf32>
    %167 = vector.extract_strided_slice %159 {offsets = [0, 8], sizes = [4, 4], strides = [1, 1]} : vector<4x16xf32> to vector<4x4xf32>
    %cst_37 = arith.constant dense<0xFF800000> : vector<4xf32>
    %168 = vector.multi_reduction <maximumf>, %167, %cst_37 [1] : vector<4x4xf32> to vector<4xf32>
    %169 = vector.shape_cast %168 : vector<4xf32> to vector<4x1xf32>
    %170 = arith.addf %166, %169 : vector<4x1xf32>
    %171 = vector.extract_strided_slice %159 {offsets = [0, 12], sizes = [4, 4], strides = [1, 1]} : vector<4x16xf32> to vector<4x4xf32>
    %cst_38 = arith.constant dense<0xFF800000> : vector<4xf32>
    %172 = vector.multi_reduction <maximumf>, %171, %cst_38 [1] : vector<4x4xf32> to vector<4xf32>
    %173 = vector.shape_cast %172 : vector<4xf32> to vector<4x1xf32>
    %174 = arith.addf %170, %173 : vector<4x1xf32>
    %175 = vector.extract_strided_slice %151 {offsets = [0, 64], sizes = [4, 64], strides = [1, 1]} : vector<4x256xf32> to vector<4x64xf32>
    %176 = vector.extract_strided_slice %175 {offsets = [0, 0], sizes = [4, 16], strides = [1, 1]} : vector<4x64xf32> to vector<4x16xf32>
    %177 = vector.extract_strided_slice %175 {offsets = [0, 16], sizes = [4, 16], strides = [1, 1]} : vector<4x64xf32> to vector<4x16xf32>
    %178 = arith.maximumf %176, %177 : vector<4x16xf32>
    %179 = vector.extract_strided_slice %175 {offsets = [0, 32], sizes = [4, 16], strides = [1, 1]} : vector<4x64xf32> to vector<4x16xf32>
    %180 = arith.maximumf %178, %179 : vector<4x16xf32>
    %181 = vector.extract_strided_slice %175 {offsets = [0, 48], sizes = [4, 16], strides = [1, 1]} : vector<4x64xf32> to vector<4x16xf32>
    %182 = arith.maximumf %180, %181 : vector<4x16xf32>
    %183 = vector.extract_strided_slice %182 {offsets = [0, 0], sizes = [4, 4], strides = [1, 1]} : vector<4x16xf32> to vector<4x4xf32>
    %cst_39 = arith.constant dense<0xFF800000> : vector<4xf32>
    %184 = vector.multi_reduction <maximumf>, %183, %cst_39 [1] : vector<4x4xf32> to vector<4xf32>
    %185 = vector.shape_cast %184 : vector<4xf32> to vector<4x1xf32>
    %186 = arith.addf %174, %185 : vector<4x1xf32>
    %187 = vector.extract_strided_slice %182 {offsets = [0, 4], sizes = [4, 4], strides = [1, 1]} : vector<4x16xf32> to vector<4x4xf32>
    %cst_40 = arith.constant dense<0xFF800000> : vector<4xf32>
    %188 = vector.multi_reduction <maximumf>, %187, %cst_40 [1] : vector<4x4xf32> to vector<4xf32>
    %189 = vector.shape_cast %188 : vector<4xf32> to vector<4x1xf32>
    %190 = arith.addf %186, %189 : vector<4x1xf32>
    %191 = vector.extract_strided_slice %182 {offsets = [0, 8], sizes = [4, 4], strides = [1, 1]} : vector<4x16xf32> to vector<4x4xf32>
    %cst_41 = arith.constant dense<0xFF800000> : vector<4xf32>
    %192 = vector.multi_reduction <maximumf>, %191, %cst_41 [1] : vector<4x4xf32> to vector<4xf32>
    %193 = vector.shape_cast %192 : vector<4xf32> to vector<4x1xf32>
    %194 = arith.addf %190, %193 : vector<4x1xf32>
    %195 = vector.extract_strided_slice %182 {offsets = [0, 12], sizes = [4, 4], strides = [1, 1]} : vector<4x16xf32> to vector<4x4xf32>
    %cst_42 = arith.constant dense<0xFF800000> : vector<4xf32>
    %196 = vector.multi_reduction <maximumf>, %195, %cst_42 [1] : vector<4x4xf32> to vector<4xf32>
    %197 = vector.shape_cast %196 : vector<4xf32> to vector<4x1xf32>
    %198 = arith.addf %194, %197 : vector<4x1xf32>
    %199 = vector.extract_strided_slice %151 {offsets = [0, 128], sizes = [4, 64], strides = [1, 1]} : vector<4x256xf32> to vector<4x64xf32>
    %200 = vector.extract_strided_slice %199 {offsets = [0, 0], sizes = [4, 16], strides = [1, 1]} : vector<4x64xf32> to vector<4x16xf32>
    %201 = vector.extract_strided_slice %199 {offsets = [0, 16], sizes = [4, 16], strides = [1, 1]} : vector<4x64xf32> to vector<4x16xf32>
    %202 = arith.maximumf %200, %201 : vector<4x16xf32>
    %203 = vector.extract_strided_slice %199 {offsets = [0, 32], sizes = [4, 16], strides = [1, 1]} : vector<4x64xf32> to vector<4x16xf32>
    %204 = arith.maximumf %202, %203 : vector<4x16xf32>
    %205 = vector.extract_strided_slice %199 {offsets = [0, 48], sizes = [4, 16], strides = [1, 1]} : vector<4x64xf32> to vector<4x16xf32>
    %206 = arith.maximumf %204, %205 : vector<4x16xf32>
    %207 = vector.extract_strided_slice %206 {offsets = [0, 0], sizes = [4, 4], strides = [1, 1]} : vector<4x16xf32> to vector<4x4xf32>
    %cst_43 = arith.constant dense<0xFF800000> : vector<4xf32>
    %208 = vector.multi_reduction <maximumf>, %207, %cst_43 [1] : vector<4x4xf32> to vector<4xf32>
    %209 = vector.shape_cast %208 : vector<4xf32> to vector<4x1xf32>
    %210 = arith.addf %198, %209 : vector<4x1xf32>
    %211 = vector.extract_strided_slice %206 {offsets = [0, 4], sizes = [4, 4], strides = [1, 1]} : vector<4x16xf32> to vector<4x4xf32>
    %cst_44 = arith.constant dense<0xFF800000> : vector<4xf32>
    %212 = vector.multi_reduction <maximumf>, %211, %cst_44 [1] : vector<4x4xf32> to vector<4xf32>
    %213 = vector.shape_cast %212 : vector<4xf32> to vector<4x1xf32>
    %214 = arith.addf %210, %213 : vector<4x1xf32>
    %215 = vector.extract_strided_slice %206 {offsets = [0, 8], sizes = [4, 4], strides = [1, 1]} : vector<4x16xf32> to vector<4x4xf32>
    %cst_45 = arith.constant dense<0xFF800000> : vector<4xf32>
    %216 = vector.multi_reduction <maximumf>, %215, %cst_45 [1] : vector<4x4xf32> to vector<4xf32>
    %217 = vector.shape_cast %216 : vector<4xf32> to vector<4x1xf32>
    %218 = arith.addf %214, %217 : vector<4x1xf32>
    %219 = vector.extract_strided_slice %206 {offsets = [0, 12], sizes = [4, 4], strides = [1, 1]} : vector<4x16xf32> to vector<4x4xf32>
    %cst_46 = arith.constant dense<0xFF800000> : vector<4xf32>
    %220 = vector.multi_reduction <maximumf>, %219, %cst_46 [1] : vector<4x4xf32> to vector<4xf32>
    %221 = vector.shape_cast %220 : vector<4xf32> to vector<4x1xf32>
    %222 = arith.addf %218, %221 : vector<4x1xf32>
    %223 = vector.extract_strided_slice %151 {offsets = [0, 192], sizes = [4, 64], strides = [1, 1]} : vector<4x256xf32> to vector<4x64xf32>
    %224 = vector.extract_strided_slice %223 {offsets = [0, 0], sizes = [4, 16], strides = [1, 1]} : vector<4x64xf32> to vector<4x16xf32>
    %225 = vector.extract_strided_slice %223 {offsets = [0, 16], sizes = [4, 16], strides = [1, 1]} : vector<4x64xf32> to vector<4x16xf32>
    %226 = arith.maximumf %224, %225 : vector<4x16xf32>
    %227 = vector.extract_strided_slice %223 {offsets = [0, 32], sizes = [4, 16], strides = [1, 1]} : vector<4x64xf32> to vector<4x16xf32>
    %228 = arith.maximumf %226, %227 : vector<4x16xf32>
    %229 = vector.extract_strided_slice %223 {offsets = [0, 48], sizes = [4, 16], strides = [1, 1]} : vector<4x64xf32> to vector<4x16xf32>
    %230 = arith.maximumf %228, %229 : vector<4x16xf32>
    %231 = vector.extract_strided_slice %230 {offsets = [0, 0], sizes = [4, 4], strides = [1, 1]} : vector<4x16xf32> to vector<4x4xf32>
    %cst_47 = arith.constant dense<0xFF800000> : vector<4xf32>
    %232 = vector.multi_reduction <maximumf>, %231, %cst_47 [1] : vector<4x4xf32> to vector<4xf32>
    %233 = vector.shape_cast %232 : vector<4xf32> to vector<4x1xf32>
    %234 = arith.addf %222, %233 : vector<4x1xf32>
    %235 = vector.extract_strided_slice %230 {offsets = [0, 4], sizes = [4, 4], strides = [1, 1]} : vector<4x16xf32> to vector<4x4xf32>
    %cst_48 = arith.constant dense<0xFF800000> : vector<4xf32>
    %236 = vector.multi_reduction <maximumf>, %235, %cst_48 [1] : vector<4x4xf32> to vector<4xf32>
    %237 = vector.shape_cast %236 : vector<4xf32> to vector<4x1xf32>
    %238 = arith.addf %234, %237 : vector<4x1xf32>
    %239 = vector.extract_strided_slice %230 {offsets = [0, 8], sizes = [4, 4], strides = [1, 1]} : vector<4x16xf32> to vector<4x4xf32>
    %cst_49 = arith.constant dense<0xFF800000> : vector<4xf32>
    %240 = vector.multi_reduction <maximumf>, %239, %cst_49 [1] : vector<4x4xf32> to vector<4xf32>
    %241 = vector.shape_cast %240 : vector<4xf32> to vector<4x1xf32>
    %242 = arith.addf %238, %241 : vector<4x1xf32>
    %243 = vector.extract_strided_slice %230 {offsets = [0, 12], sizes = [4, 4], strides = [1, 1]} : vector<4x16xf32> to vector<4x4xf32>
    %cst_50 = arith.constant dense<0xFF800000> : vector<4xf32>
    %244 = vector.multi_reduction <maximumf>, %243, %cst_50 [1] : vector<4x4xf32> to vector<4xf32>
    %245 = vector.shape_cast %244 : vector<4xf32> to vector<4x1xf32>
    %246 = arith.addf %242, %245 : vector<4x1xf32>
    %cst_51 = arith.constant 6.250000e-02 : f32
    %247 = vector.broadcast %cst_51 : f32 to vector<4x1xf32>
    %248 = arith.mulf %246, %247 : vector<4x1xf32>
    %c0_52 = arith.constant 0 : index
    %c0_53 = arith.constant 0 : index
    %c2 = arith.constant 2 : index
    %c0_54 = arith.constant 0 : index
    %249 = vector.load %arg2[%c0_52, %c0_53, %c2, %c0_54] : memref<1x4x8x256xf32, #tpu.memory_space<vmem>>, vector<1x4x2x256xf32>
    %250 = vector.shape_cast %249 : vector<1x4x2x256xf32> to vector<4x2x256xf32>
    %cst_55 = arith.constant dense<0xFF800000> : vector<4x256xf32>
    %251 = vector.multi_reduction <maximumf>, %250, %cst_55 [1] : vector<4x2x256xf32> to vector<4x256xf32>
    %252 = vector.extract_strided_slice %251 {offsets = [0, 0], sizes = [4, 64], strides = [1, 1]} : vector<4x256xf32> to vector<4x64xf32>
    %253 = vector.extract_strided_slice %252 {offsets = [0, 0], sizes = [4, 16], strides = [1, 1]} : vector<4x64xf32> to vector<4x16xf32>
    %254 = vector.extract_strided_slice %252 {offsets = [0, 16], sizes = [4, 16], strides = [1, 1]} : vector<4x64xf32> to vector<4x16xf32>
    %255 = arith.maximumf %253, %254 : vector<4x16xf32>
    %256 = vector.extract_strided_slice %252 {offsets = [0, 32], sizes = [4, 16], strides = [1, 1]} : vector<4x64xf32> to vector<4x16xf32>
    %257 = arith.maximumf %255, %256 : vector<4x16xf32>
    %258 = vector.extract_strided_slice %252 {offsets = [0, 48], sizes = [4, 16], strides = [1, 1]} : vector<4x64xf32> to vector<4x16xf32>
    %259 = arith.maximumf %257, %258 : vector<4x16xf32>
    %260 = vector.extract_strided_slice %259 {offsets = [0, 0], sizes = [4, 4], strides = [1, 1]} : vector<4x16xf32> to vector<4x4xf32>
    %cst_56 = arith.constant dense<0xFF800000> : vector<4xf32>
    %261 = vector.multi_reduction <maximumf>, %260, %cst_56 [1] : vector<4x4xf32> to vector<4xf32>
    %262 = vector.shape_cast %261 : vector<4xf32> to vector<4x1xf32>
    %263 = vector.extract_strided_slice %259 {offsets = [0, 4], sizes = [4, 4], strides = [1, 1]} : vector<4x16xf32> to vector<4x4xf32>
    %cst_57 = arith.constant dense<0xFF800000> : vector<4xf32>
    %264 = vector.multi_reduction <maximumf>, %263, %cst_57 [1] : vector<4x4xf32> to vector<4xf32>
    %265 = vector.shape_cast %264 : vector<4xf32> to vector<4x1xf32>
    %266 = arith.addf %262, %265 : vector<4x1xf32>
    %267 = vector.extract_strided_slice %259 {offsets = [0, 8], sizes = [4, 4], strides = [1, 1]} : vector<4x16xf32> to vector<4x4xf32>
    %cst_58 = arith.constant dense<0xFF800000> : vector<4xf32>
    %268 = vector.multi_reduction <maximumf>, %267, %cst_58 [1] : vector<4x4xf32> to vector<4xf32>
    %269 = vector.shape_cast %268 : vector<4xf32> to vector<4x1xf32>
    %270 = arith.addf %266, %269 : vector<4x1xf32>
    %271 = vector.extract_strided_slice %259 {offsets = [0, 12], sizes = [4, 4], strides = [1, 1]} : vector<4x16xf32> to vector<4x4xf32>
    %cst_59 = arith.constant dense<0xFF800000> : vector<4xf32>
    %272 = vector.multi_reduction <maximumf>, %271, %cst_59 [1] : vector<4x4xf32> to vector<4xf32>
    %273 = vector.shape_cast %272 : vector<4xf32> to vector<4x1xf32>
    %274 = arith.addf %270, %273 : vector<4x1xf32>
    %275 = vector.extract_strided_slice %251 {offsets = [0, 64], sizes = [4, 64], strides = [1, 1]} : vector<4x256xf32> to vector<4x64xf32>
    %276 = vector.extract_strided_slice %275 {offsets = [0, 0], sizes = [4, 16], strides = [1, 1]} : vector<4x64xf32> to vector<4x16xf32>
    %277 = vector.extract_strided_slice %275 {offsets = [0, 16], sizes = [4, 16], strides = [1, 1]} : vector<4x64xf32> to vector<4x16xf32>
    %278 = arith.maximumf %276, %277 : vector<4x16xf32>
    %279 = vector.extract_strided_slice %275 {offsets = [0, 32], sizes = [4, 16], strides = [1, 1]} : vector<4x64xf32> to vector<4x16xf32>
    %280 = arith.maximumf %278, %279 : vector<4x16xf32>
    %281 = vector.extract_strided_slice %275 {offsets = [0, 48], sizes = [4, 16], strides = [1, 1]} : vector<4x64xf32> to vector<4x16xf32>
    %282 = arith.maximumf %280, %281 : vector<4x16xf32>
    %283 = vector.extract_strided_slice %282 {offsets = [0, 0], sizes = [4, 4], strides = [1, 1]} : vector<4x16xf32> to vector<4x4xf32>
    %cst_60 = arith.constant dense<0xFF800000> : vector<4xf32>
    %284 = vector.multi_reduction <maximumf>, %283, %cst_60 [1] : vector<4x4xf32> to vector<4xf32>
    %285 = vector.shape_cast %284 : vector<4xf32> to vector<4x1xf32>
    %286 = arith.addf %274, %285 : vector<4x1xf32>
    %287 = vector.extract_strided_slice %282 {offsets = [0, 4], sizes = [4, 4], strides = [1, 1]} : vector<4x16xf32> to vector<4x4xf32>
    %cst_61 = arith.constant dense<0xFF800000> : vector<4xf32>
    %288 = vector.multi_reduction <maximumf>, %287, %cst_61 [1] : vector<4x4xf32> to vector<4xf32>
    %289 = vector.shape_cast %288 : vector<4xf32> to vector<4x1xf32>
    %290 = arith.addf %286, %289 : vector<4x1xf32>
    %291 = vector.extract_strided_slice %282 {offsets = [0, 8], sizes = [4, 4], strides = [1, 1]} : vector<4x16xf32> to vector<4x4xf32>
    %cst_62 = arith.constant dense<0xFF800000> : vector<4xf32>
    %292 = vector.multi_reduction <maximumf>, %291, %cst_62 [1] : vector<4x4xf32> to vector<4xf32>
    %293 = vector.shape_cast %292 : vector<4xf32> to vector<4x1xf32>
    %294 = arith.addf %290, %293 : vector<4x1xf32>
    %295 = vector.extract_strided_slice %282 {offsets = [0, 12], sizes = [4, 4], strides = [1, 1]} : vector<4x16xf32> to vector<4x4xf32>
    %cst_63 = arith.constant dense<0xFF800000> : vector<4xf32>
    %296 = vector.multi_reduction <maximumf>, %295, %cst_63 [1] : vector<4x4xf32> to vector<4xf32>
    %297 = vector.shape_cast %296 : vector<4xf32> to vector<4x1xf32>
    %298 = arith.addf %294, %297 : vector<4x1xf32>
    %299 = vector.extract_strided_slice %251 {offsets = [0, 128], sizes = [4, 64], strides = [1, 1]} : vector<4x256xf32> to vector<4x64xf32>
    %300 = vector.extract_strided_slice %299 {offsets = [0, 0], sizes = [4, 16], strides = [1, 1]} : vector<4x64xf32> to vector<4x16xf32>
    %301 = vector.extract_strided_slice %299 {offsets = [0, 16], sizes = [4, 16], strides = [1, 1]} : vector<4x64xf32> to vector<4x16xf32>
    %302 = arith.maximumf %300, %301 : vector<4x16xf32>
    %303 = vector.extract_strided_slice %299 {offsets = [0, 32], sizes = [4, 16], strides = [1, 1]} : vector<4x64xf32> to vector<4x16xf32>
    %304 = arith.maximumf %302, %303 : vector<4x16xf32>
    %305 = vector.extract_strided_slice %299 {offsets = [0, 48], sizes = [4, 16], strides = [1, 1]} : vector<4x64xf32> to vector<4x16xf32>
    %306 = arith.maximumf %304, %305 : vector<4x16xf32>
    %307 = vector.extract_strided_slice %306 {offsets = [0, 0], sizes = [4, 4], strides = [1, 1]} : vector<4x16xf32> to vector<4x4xf32>
    %cst_64 = arith.constant dense<0xFF800000> : vector<4xf32>
    %308 = vector.multi_reduction <maximumf>, %307, %cst_64 [1] : vector<4x4xf32> to vector<4xf32>
    %309 = vector.shape_cast %308 : vector<4xf32> to vector<4x1xf32>
    %310 = arith.addf %298, %309 : vector<4x1xf32>
    %311 = vector.extract_strided_slice %306 {offsets = [0, 4], sizes = [4, 4], strides = [1, 1]} : vector<4x16xf32> to vector<4x4xf32>
    %cst_65 = arith.constant dense<0xFF800000> : vector<4xf32>
    %312 = vector.multi_reduction <maximumf>, %311, %cst_65 [1] : vector<4x4xf32> to vector<4xf32>
    %313 = vector.shape_cast %312 : vector<4xf32> to vector<4x1xf32>
    %314 = arith.addf %310, %313 : vector<4x1xf32>
    %315 = vector.extract_strided_slice %306 {offsets = [0, 8], sizes = [4, 4], strides = [1, 1]} : vector<4x16xf32> to vector<4x4xf32>
    %cst_66 = arith.constant dense<0xFF800000> : vector<4xf32>
    %316 = vector.multi_reduction <maximumf>, %315, %cst_66 [1] : vector<4x4xf32> to vector<4xf32>
    %317 = vector.shape_cast %316 : vector<4xf32> to vector<4x1xf32>
    %318 = arith.addf %314, %317 : vector<4x1xf32>
    %319 = vector.extract_strided_slice %306 {offsets = [0, 12], sizes = [4, 4], strides = [1, 1]} : vector<4x16xf32> to vector<4x4xf32>
    %cst_67 = arith.constant dense<0xFF800000> : vector<4xf32>
    %320 = vector.multi_reduction <maximumf>, %319, %cst_67 [1] : vector<4x4xf32> to vector<4xf32>
    %321 = vector.shape_cast %320 : vector<4xf32> to vector<4x1xf32>
    %322 = arith.addf %318, %321 : vector<4x1xf32>
    %323 = vector.extract_strided_slice %251 {offsets = [0, 192], sizes = [4, 64], strides = [1, 1]} : vector<4x256xf32> to vector<4x64xf32>
    %324 = vector.extract_strided_slice %323 {offsets = [0, 0], sizes = [4, 16], strides = [1, 1]} : vector<4x64xf32> to vector<4x16xf32>
    %325 = vector.extract_strided_slice %323 {offsets = [0, 16], sizes = [4, 16], strides = [1, 1]} : vector<4x64xf32> to vector<4x16xf32>
    %326 = arith.maximumf %324, %325 : vector<4x16xf32>
    %327 = vector.extract_strided_slice %323 {offsets = [0, 32], sizes = [4, 16], strides = [1, 1]} : vector<4x64xf32> to vector<4x16xf32>
    %328 = arith.maximumf %326, %327 : vector<4x16xf32>
    %329 = vector.extract_strided_slice %323 {offsets = [0, 48], sizes = [4, 16], strides = [1, 1]} : vector<4x64xf32> to vector<4x16xf32>
    %330 = arith.maximumf %328, %329 : vector<4x16xf32>
    %331 = vector.extract_strided_slice %330 {offsets = [0, 0], sizes = [4, 4], strides = [1, 1]} : vector<4x16xf32> to vector<4x4xf32>
    %cst_68 = arith.constant dense<0xFF800000> : vector<4xf32>
    %332 = vector.multi_reduction <maximumf>, %331, %cst_68 [1] : vector<4x4xf32> to vector<4xf32>
    %333 = vector.shape_cast %332 : vector<4xf32> to vector<4x1xf32>
    %334 = arith.addf %322, %333 : vector<4x1xf32>
    %335 = vector.extract_strided_slice %330 {offsets = [0, 4], sizes = [4, 4], strides = [1, 1]} : vector<4x16xf32> to vector<4x4xf32>
    %cst_69 = arith.constant dense<0xFF800000> : vector<4xf32>
    %336 = vector.multi_reduction <maximumf>, %335, %cst_69 [1] : vector<4x4xf32> to vector<4xf32>
    %337 = vector.shape_cast %336 : vector<4xf32> to vector<4x1xf32>
    %338 = arith.addf %334, %337 : vector<4x1xf32>
    %339 = vector.extract_strided_slice %330 {offsets = [0, 8], sizes = [4, 4], strides = [1, 1]} : vector<4x16xf32> to vector<4x4xf32>
    %cst_70 = arith.constant dense<0xFF800000> : vector<4xf32>
    %340 = vector.multi_reduction <maximumf>, %339, %cst_70 [1] : vector<4x4xf32> to vector<4xf32>
    %341 = vector.shape_cast %340 : vector<4xf32> to vector<4x1xf32>
    %342 = arith.addf %338, %341 : vector<4x1xf32>
    %343 = vector.extract_strided_slice %330 {offsets = [0, 12], sizes = [4, 4], strides = [1, 1]} : vector<4x16xf32> to vector<4x4xf32>
    %cst_71 = arith.constant dense<0xFF800000> : vector<4xf32>
    %344 = vector.multi_reduction <maximumf>, %343, %cst_71 [1] : vector<4x4xf32> to vector<4xf32>
    %345 = vector.shape_cast %344 : vector<4xf32> to vector<4x1xf32>
    %346 = arith.addf %342, %345 : vector<4x1xf32>
    %cst_72 = arith.constant 6.250000e-02 : f32
    %347 = vector.broadcast %cst_72 : f32 to vector<4x1xf32>
    %348 = arith.mulf %346, %347 : vector<4x1xf32>
    %c0_73 = arith.constant 0 : index
    %c0_74 = arith.constant 0 : index
    %c4_75 = arith.constant 4 : index
    %c0_76 = arith.constant 0 : index
    %349 = vector.load %arg2[%c0_73, %c0_74, %c4_75, %c0_76] : memref<1x4x8x256xf32, #tpu.memory_space<vmem>>, vector<1x4x2x256xf32>
    %350 = vector.shape_cast %349 : vector<1x4x2x256xf32> to vector<4x2x256xf32>
    %cst_77 = arith.constant dense<0xFF800000> : vector<4x256xf32>
    %351 = vector.multi_reduction <maximumf>, %350, %cst_77 [1] : vector<4x2x256xf32> to vector<4x256xf32>
    %352 = vector.extract_strided_slice %351 {offsets = [0, 0], sizes = [4, 64], strides = [1, 1]} : vector<4x256xf32> to vector<4x64xf32>
    %353 = vector.extract_strided_slice %352 {offsets = [0, 0], sizes = [4, 16], strides = [1, 1]} : vector<4x64xf32> to vector<4x16xf32>
    %354 = vector.extract_strided_slice %352 {offsets = [0, 16], sizes = [4, 16], strides = [1, 1]} : vector<4x64xf32> to vector<4x16xf32>
    %355 = arith.maximumf %353, %354 : vector<4x16xf32>
    %356 = vector.extract_strided_slice %352 {offsets = [0, 32], sizes = [4, 16], strides = [1, 1]} : vector<4x64xf32> to vector<4x16xf32>
    %357 = arith.maximumf %355, %356 : vector<4x16xf32>
    %358 = vector.extract_strided_slice %352 {offsets = [0, 48], sizes = [4, 16], strides = [1, 1]} : vector<4x64xf32> to vector<4x16xf32>
    %359 = arith.maximumf %357, %358 : vector<4x16xf32>
    %360 = vector.extract_strided_slice %359 {offsets = [0, 0], sizes = [4, 4], strides = [1, 1]} : vector<4x16xf32> to vector<4x4xf32>
    %cst_78 = arith.constant dense<0xFF800000> : vector<4xf32>
    %361 = vector.multi_reduction <maximumf>, %360, %cst_78 [1] : vector<4x4xf32> to vector<4xf32>
    %362 = vector.shape_cast %361 : vector<4xf32> to vector<4x1xf32>
    %363 = vector.extract_strided_slice %359 {offsets = [0, 4], sizes = [4, 4], strides = [1, 1]} : vector<4x16xf32> to vector<4x4xf32>
    %cst_79 = arith.constant dense<0xFF800000> : vector<4xf32>
    %364 = vector.multi_reduction <maximumf>, %363, %cst_79 [1] : vector<4x4xf32> to vector<4xf32>
    %365 = vector.shape_cast %364 : vector<4xf32> to vector<4x1xf32>
    %366 = arith.addf %362, %365 : vector<4x1xf32>
    %367 = vector.extract_strided_slice %359 {offsets = [0, 8], sizes = [4, 4], strides = [1, 1]} : vector<4x16xf32> to vector<4x4xf32>
    %cst_80 = arith.constant dense<0xFF800000> : vector<4xf32>
    %368 = vector.multi_reduction <maximumf>, %367, %cst_80 [1] : vector<4x4xf32> to vector<4xf32>
    %369 = vector.shape_cast %368 : vector<4xf32> to vector<4x1xf32>
    %370 = arith.addf %366, %369 : vector<4x1xf32>
    %371 = vector.extract_strided_slice %359 {offsets = [0, 12], sizes = [4, 4], strides = [1, 1]} : vector<4x16xf32> to vector<4x4xf32>
    %cst_81 = arith.constant dense<0xFF800000> : vector<4xf32>
    %372 = vector.multi_reduction <maximumf>, %371, %cst_81 [1] : vector<4x4xf32> to vector<4xf32>
    %373 = vector.shape_cast %372 : vector<4xf32> to vector<4x1xf32>
    %374 = arith.addf %370, %373 : vector<4x1xf32>
    %375 = vector.extract_strided_slice %351 {offsets = [0, 64], sizes = [4, 64], strides = [1, 1]} : vector<4x256xf32> to vector<4x64xf32>
    %376 = vector.extract_strided_slice %375 {offsets = [0, 0], sizes = [4, 16], strides = [1, 1]} : vector<4x64xf32> to vector<4x16xf32>
    %377 = vector.extract_strided_slice %375 {offsets = [0, 16], sizes = [4, 16], strides = [1, 1]} : vector<4x64xf32> to vector<4x16xf32>
    %378 = arith.maximumf %376, %377 : vector<4x16xf32>
    %379 = vector.extract_strided_slice %375 {offsets = [0, 32], sizes = [4, 16], strides = [1, 1]} : vector<4x64xf32> to vector<4x16xf32>
    %380 = arith.maximumf %378, %379 : vector<4x16xf32>
    %381 = vector.extract_strided_slice %375 {offsets = [0, 48], sizes = [4, 16], strides = [1, 1]} : vector<4x64xf32> to vector<4x16xf32>
    %382 = arith.maximumf %380, %381 : vector<4x16xf32>
    %383 = vector.extract_strided_slice %382 {offsets = [0, 0], sizes = [4, 4], strides = [1, 1]} : vector<4x16xf32> to vector<4x4xf32>
    %cst_82 = arith.constant dense<0xFF800000> : vector<4xf32>
    %384 = vector.multi_reduction <maximumf>, %383, %cst_82 [1] : vector<4x4xf32> to vector<4xf32>
    %385 = vector.shape_cast %384 : vector<4xf32> to vector<4x1xf32>
    %386 = arith.addf %374, %385 : vector<4x1xf32>
    %387 = vector.extract_strided_slice %382 {offsets = [0, 4], sizes = [4, 4], strides = [1, 1]} : vector<4x16xf32> to vector<4x4xf32>
    %cst_83 = arith.constant dense<0xFF800000> : vector<4xf32>
    %388 = vector.multi_reduction <maximumf>, %387, %cst_83 [1] : vector<4x4xf32> to vector<4xf32>
    %389 = vector.shape_cast %388 : vector<4xf32> to vector<4x1xf32>
    %390 = arith.addf %386, %389 : vector<4x1xf32>
    %391 = vector.extract_strided_slice %382 {offsets = [0, 8], sizes = [4, 4], strides = [1, 1]} : vector<4x16xf32> to vector<4x4xf32>
    %cst_84 = arith.constant dense<0xFF800000> : vector<4xf32>
    %392 = vector.multi_reduction <maximumf>, %391, %cst_84 [1] : vector<4x4xf32> to vector<4xf32>
    %393 = vector.shape_cast %392 : vector<4xf32> to vector<4x1xf32>
    %394 = arith.addf %390, %393 : vector<4x1xf32>
    %395 = vector.extract_strided_slice %382 {offsets = [0, 12], sizes = [4, 4], strides = [1, 1]} : vector<4x16xf32> to vector<4x4xf32>
    %cst_85 = arith.constant dense<0xFF800000> : vector<4xf32>
    %396 = vector.multi_reduction <maximumf>, %395, %cst_85 [1] : vector<4x4xf32> to vector<4xf32>
    %397 = vector.shape_cast %396 : vector<4xf32> to vector<4x1xf32>
    %398 = arith.addf %394, %397 : vector<4x1xf32>
    %399 = vector.extract_strided_slice %351 {offsets = [0, 128], sizes = [4, 64], strides = [1, 1]} : vector<4x256xf32> to vector<4x64xf32>
    %400 = vector.extract_strided_slice %399 {offsets = [0, 0], sizes = [4, 16], strides = [1, 1]} : vector<4x64xf32> to vector<4x16xf32>
    %401 = vector.extract_strided_slice %399 {offsets = [0, 16], sizes = [4, 16], strides = [1, 1]} : vector<4x64xf32> to vector<4x16xf32>
    %402 = arith.maximumf %400, %401 : vector<4x16xf32>
    %403 = vector.extract_strided_slice %399 {offsets = [0, 32], sizes = [4, 16], strides = [1, 1]} : vector<4x64xf32> to vector<4x16xf32>
    %404 = arith.maximumf %402, %403 : vector<4x16xf32>
    %405 = vector.extract_strided_slice %399 {offsets = [0, 48], sizes = [4, 16], strides = [1, 1]} : vector<4x64xf32> to vector<4x16xf32>
    %406 = arith.maximumf %404, %405 : vector<4x16xf32>
    %407 = vector.extract_strided_slice %406 {offsets = [0, 0], sizes = [4, 4], strides = [1, 1]} : vector<4x16xf32> to vector<4x4xf32>
    %cst_86 = arith.constant dense<0xFF800000> : vector<4xf32>
    %408 = vector.multi_reduction <maximumf>, %407, %cst_86 [1] : vector<4x4xf32> to vector<4xf32>
    %409 = vector.shape_cast %408 : vector<4xf32> to vector<4x1xf32>
    %410 = arith.addf %398, %409 : vector<4x1xf32>
    %411 = vector.extract_strided_slice %406 {offsets = [0, 4], sizes = [4, 4], strides = [1, 1]} : vector<4x16xf32> to vector<4x4xf32>
    %cst_87 = arith.constant dense<0xFF800000> : vector<4xf32>
    %412 = vector.multi_reduction <maximumf>, %411, %cst_87 [1] : vector<4x4xf32> to vector<4xf32>
    %413 = vector.shape_cast %412 : vector<4xf32> to vector<4x1xf32>
    %414 = arith.addf %410, %413 : vector<4x1xf32>
    %415 = vector.extract_strided_slice %406 {offsets = [0, 8], sizes = [4, 4], strides = [1, 1]} : vector<4x16xf32> to vector<4x4xf32>
    %cst_88 = arith.constant dense<0xFF800000> : vector<4xf32>
    %416 = vector.multi_reduction <maximumf>, %415, %cst_88 [1] : vector<4x4xf32> to vector<4xf32>
    %417 = vector.shape_cast %416 : vector<4xf32> to vector<4x1xf32>
    %418 = arith.addf %414, %417 : vector<4x1xf32>
    %419 = vector.extract_strided_slice %406 {offsets = [0, 12], sizes = [4, 4], strides = [1, 1]} : vector<4x16xf32> to vector<4x4xf32>
    %cst_89 = arith.constant dense<0xFF800000> : vector<4xf32>
    %420 = vector.multi_reduction <maximumf>, %419, %cst_89 [1] : vector<4x4xf32> to vector<4xf32>
    %421 = vector.shape_cast %420 : vector<4xf32> to vector<4x1xf32>
    %422 = arith.addf %418, %421 : vector<4x1xf32>
    %423 = vector.extract_strided_slice %351 {offsets = [0, 192], sizes = [4, 64], strides = [1, 1]} : vector<4x256xf32> to vector<4x64xf32>
    %424 = vector.extract_strided_slice %423 {offsets = [0, 0], sizes = [4, 16], strides = [1, 1]} : vector<4x64xf32> to vector<4x16xf32>
    %425 = vector.extract_strided_slice %423 {offsets = [0, 16], sizes = [4, 16], strides = [1, 1]} : vector<4x64xf32> to vector<4x16xf32>
    %426 = arith.maximumf %424, %425 : vector<4x16xf32>
    %427 = vector.extract_strided_slice %423 {offsets = [0, 32], sizes = [4, 16], strides = [1, 1]} : vector<4x64xf32> to vector<4x16xf32>
    %428 = arith.maximumf %426, %427 : vector<4x16xf32>
    %429 = vector.extract_strided_slice %423 {offsets = [0, 48], sizes = [4, 16], strides = [1, 1]} : vector<4x64xf32> to vector<4x16xf32>
    %430 = arith.maximumf %428, %429 : vector<4x16xf32>
    %431 = vector.extract_strided_slice %430 {offsets = [0, 0], sizes = [4, 4], strides = [1, 1]} : vector<4x16xf32> to vector<4x4xf32>
    %cst_90 = arith.constant dense<0xFF800000> : vector<4xf32>
    %432 = vector.multi_reduction <maximumf>, %431, %cst_90 [1] : vector<4x4xf32> to vector<4xf32>
    %433 = vector.shape_cast %432 : vector<4xf32> to vector<4x1xf32>
    %434 = arith.addf %422, %433 : vector<4x1xf32>
    %435 = vector.extract_strided_slice %430 {offsets = [0, 4], sizes = [4, 4], strides = [1, 1]} : vector<4x16xf32> to vector<4x4xf32>
    %cst_91 = arith.constant dense<0xFF800000> : vector<4xf32>
    %436 = vector.multi_reduction <maximumf>, %435, %cst_91 [1] : vector<4x4xf32> to vector<4xf32>
    %437 = vector.shape_cast %436 : vector<4xf32> to vector<4x1xf32>
    %438 = arith.addf %434, %437 : vector<4x1xf32>
    %439 = vector.extract_strided_slice %430 {offsets = [0, 8], sizes = [4, 4], strides = [1, 1]} : vector<4x16xf32> to vector<4x4xf32>
    %cst_92 = arith.constant dense<0xFF800000> : vector<4xf32>
    %440 = vector.multi_reduction <maximumf>, %439, %cst_92 [1] : vector<4x4xf32> to vector<4xf32>
    %441 = vector.shape_cast %440 : vector<4xf32> to vector<4x1xf32>
    %442 = arith.addf %438, %441 : vector<4x1xf32>
    %443 = vector.extract_strided_slice %430 {offsets = [0, 12], sizes = [4, 4], strides = [1, 1]} : vector<4x16xf32> to vector<4x4xf32>
    %cst_93 = arith.constant dense<0xFF800000> : vector<4xf32>
    %444 = vector.multi_reduction <maximumf>, %443, %cst_93 [1] : vector<4x4xf32> to vector<4xf32>
    %445 = vector.shape_cast %444 : vector<4xf32> to vector<4x1xf32>
    %446 = arith.addf %442, %445 : vector<4x1xf32>
    %cst_94 = arith.constant 6.250000e-02 : f32
    %447 = vector.broadcast %cst_94 : f32 to vector<4x1xf32>
    %448 = arith.mulf %446, %447 : vector<4x1xf32>
    %c0_95 = arith.constant 0 : index
    %c0_96 = arith.constant 0 : index
    %c6 = arith.constant 6 : index
    %c0_97 = arith.constant 0 : index
    %449 = vector.load %arg2[%c0_95, %c0_96, %c6, %c0_97] : memref<1x4x8x256xf32, #tpu.memory_space<vmem>>, vector<1x4x2x256xf32>
    %450 = vector.shape_cast %449 : vector<1x4x2x256xf32> to vector<4x2x256xf32>
    %cst_98 = arith.constant dense<0xFF800000> : vector<4x256xf32>
    %451 = vector.multi_reduction <maximumf>, %450, %cst_98 [1] : vector<4x2x256xf32> to vector<4x256xf32>
    %452 = vector.extract_strided_slice %451 {offsets = [0, 0], sizes = [4, 64], strides = [1, 1]} : vector<4x256xf32> to vector<4x64xf32>
    %453 = vector.extract_strided_slice %452 {offsets = [0, 0], sizes = [4, 16], strides = [1, 1]} : vector<4x64xf32> to vector<4x16xf32>
    %454 = vector.extract_strided_slice %452 {offsets = [0, 16], sizes = [4, 16], strides = [1, 1]} : vector<4x64xf32> to vector<4x16xf32>
    %455 = arith.maximumf %453, %454 : vector<4x16xf32>
    %456 = vector.extract_strided_slice %452 {offsets = [0, 32], sizes = [4, 16], strides = [1, 1]} : vector<4x64xf32> to vector<4x16xf32>
    %457 = arith.maximumf %455, %456 : vector<4x16xf32>
    %458 = vector.extract_strided_slice %452 {offsets = [0, 48], sizes = [4, 16], strides = [1, 1]} : vector<4x64xf32> to vector<4x16xf32>
    %459 = arith.maximumf %457, %458 : vector<4x16xf32>
    %460 = vector.extract_strided_slice %459 {offsets = [0, 0], sizes = [4, 4], strides = [1, 1]} : vector<4x16xf32> to vector<4x4xf32>
    %cst_99 = arith.constant dense<0xFF800000> : vector<4xf32>
    %461 = vector.multi_reduction <maximumf>, %460, %cst_99 [1] : vector<4x4xf32> to vector<4xf32>
    %462 = vector.shape_cast %461 : vector<4xf32> to vector<4x1xf32>
    %463 = vector.extract_strided_slice %459 {offsets = [0, 4], sizes = [4, 4], strides = [1, 1]} : vector<4x16xf32> to vector<4x4xf32>
    %cst_100 = arith.constant dense<0xFF800000> : vector<4xf32>
    %464 = vector.multi_reduction <maximumf>, %463, %cst_100 [1] : vector<4x4xf32> to vector<4xf32>
    %465 = vector.shape_cast %464 : vector<4xf32> to vector<4x1xf32>
    %466 = arith.addf %462, %465 : vector<4x1xf32>
    %467 = vector.extract_strided_slice %459 {offsets = [0, 8], sizes = [4, 4], strides = [1, 1]} : vector<4x16xf32> to vector<4x4xf32>
    %cst_101 = arith.constant dense<0xFF800000> : vector<4xf32>
    %468 = vector.multi_reduction <maximumf>, %467, %cst_101 [1] : vector<4x4xf32> to vector<4xf32>
    %469 = vector.shape_cast %468 : vector<4xf32> to vector<4x1xf32>
    %470 = arith.addf %466, %469 : vector<4x1xf32>
    %471 = vector.extract_strided_slice %459 {offsets = [0, 12], sizes = [4, 4], strides = [1, 1]} : vector<4x16xf32> to vector<4x4xf32>
    %cst_102 = arith.constant dense<0xFF800000> : vector<4xf32>
    %472 = vector.multi_reduction <maximumf>, %471, %cst_102 [1] : vector<4x4xf32> to vector<4xf32>
    %473 = vector.shape_cast %472 : vector<4xf32> to vector<4x1xf32>
    %474 = arith.addf %470, %473 : vector<4x1xf32>
    %475 = vector.extract_strided_slice %451 {offsets = [0, 64], sizes = [4, 64], strides = [1, 1]} : vector<4x256xf32> to vector<4x64xf32>
    %476 = vector.extract_strided_slice %475 {offsets = [0, 0], sizes = [4, 16], strides = [1, 1]} : vector<4x64xf32> to vector<4x16xf32>
    %477 = vector.extract_strided_slice %475 {offsets = [0, 16], sizes = [4, 16], strides = [1, 1]} : vector<4x64xf32> to vector<4x16xf32>
    %478 = arith.maximumf %476, %477 : vector<4x16xf32>
    %479 = vector.extract_strided_slice %475 {offsets = [0, 32], sizes = [4, 16], strides = [1, 1]} : vector<4x64xf32> to vector<4x16xf32>
    %480 = arith.maximumf %478, %479 : vector<4x16xf32>
    %481 = vector.extract_strided_slice %475 {offsets = [0, 48], sizes = [4, 16], strides = [1, 1]} : vector<4x64xf32> to vector<4x16xf32>
    %482 = arith.maximumf %480, %481 : vector<4x16xf32>
    %483 = vector.extract_strided_slice %482 {offsets = [0, 0], sizes = [4, 4], strides = [1, 1]} : vector<4x16xf32> to vector<4x4xf32>
    %cst_103 = arith.constant dense<0xFF800000> : vector<4xf32>
    %484 = vector.multi_reduction <maximumf>, %483, %cst_103 [1] : vector<4x4xf32> to vector<4xf32>
    %485 = vector.shape_cast %484 : vector<4xf32> to vector<4x1xf32>
    %486 = arith.addf %474, %485 : vector<4x1xf32>
    %487 = vector.extract_strided_slice %482 {offsets = [0, 4], sizes = [4, 4], strides = [1, 1]} : vector<4x16xf32> to vector<4x4xf32>
    %cst_104 = arith.constant dense<0xFF800000> : vector<4xf32>
    %488 = vector.multi_reduction <maximumf>, %487, %cst_104 [1] : vector<4x4xf32> to vector<4xf32>
    %489 = vector.shape_cast %488 : vector<4xf32> to vector<4x1xf32>
    %490 = arith.addf %486, %489 : vector<4x1xf32>
    %491 = vector.extract_strided_slice %482 {offsets = [0, 8], sizes = [4, 4], strides = [1, 1]} : vector<4x16xf32> to vector<4x4xf32>
    %cst_105 = arith.constant dense<0xFF800000> : vector<4xf32>
    %492 = vector.multi_reduction <maximumf>, %491, %cst_105 [1] : vector<4x4xf32> to vector<4xf32>
    %493 = vector.shape_cast %492 : vector<4xf32> to vector<4x1xf32>
    %494 = arith.addf %490, %493 : vector<4x1xf32>
    %495 = vector.extract_strided_slice %482 {offsets = [0, 12], sizes = [4, 4], strides = [1, 1]} : vector<4x16xf32> to vector<4x4xf32>
    %cst_106 = arith.constant dense<0xFF800000> : vector<4xf32>
    %496 = vector.multi_reduction <maximumf>, %495, %cst_106 [1] : vector<4x4xf32> to vector<4xf32>
    %497 = vector.shape_cast %496 : vector<4xf32> to vector<4x1xf32>
    %498 = arith.addf %494, %497 : vector<4x1xf32>
    %499 = vector.extract_strided_slice %451 {offsets = [0, 128], sizes = [4, 64], strides = [1, 1]} : vector<4x256xf32> to vector<4x64xf32>
    %500 = vector.extract_strided_slice %499 {offsets = [0, 0], sizes = [4, 16], strides = [1, 1]} : vector<4x64xf32> to vector<4x16xf32>
    %501 = vector.extract_strided_slice %499 {offsets = [0, 16], sizes = [4, 16], strides = [1, 1]} : vector<4x64xf32> to vector<4x16xf32>
    %502 = arith.maximumf %500, %501 : vector<4x16xf32>
    %503 = vector.extract_strided_slice %499 {offsets = [0, 32], sizes = [4, 16], strides = [1, 1]} : vector<4x64xf32> to vector<4x16xf32>
    %504 = arith.maximumf %502, %503 : vector<4x16xf32>
    %505 = vector.extract_strided_slice %499 {offsets = [0, 48], sizes = [4, 16], strides = [1, 1]} : vector<4x64xf32> to vector<4x16xf32>
    %506 = arith.maximumf %504, %505 : vector<4x16xf32>
    %507 = vector.extract_strided_slice %506 {offsets = [0, 0], sizes = [4, 4], strides = [1, 1]} : vector<4x16xf32> to vector<4x4xf32>
    %cst_107 = arith.constant dense<0xFF800000> : vector<4xf32>
    %508 = vector.multi_reduction <maximumf>, %507, %cst_107 [1] : vector<4x4xf32> to vector<4xf32>
    %509 = vector.shape_cast %508 : vector<4xf32> to vector<4x1xf32>
    %510 = arith.addf %498, %509 : vector<4x1xf32>
    %511 = vector.extract_strided_slice %506 {offsets = [0, 4], sizes = [4, 4], strides = [1, 1]} : vector<4x16xf32> to vector<4x4xf32>
    %cst_108 = arith.constant dense<0xFF800000> : vector<4xf32>
    %512 = vector.multi_reduction <maximumf>, %511, %cst_108 [1] : vector<4x4xf32> to vector<4xf32>
    %513 = vector.shape_cast %512 : vector<4xf32> to vector<4x1xf32>
    %514 = arith.addf %510, %513 : vector<4x1xf32>
    %515 = vector.extract_strided_slice %506 {offsets = [0, 8], sizes = [4, 4], strides = [1, 1]} : vector<4x16xf32> to vector<4x4xf32>
    %cst_109 = arith.constant dense<0xFF800000> : vector<4xf32>
    %516 = vector.multi_reduction <maximumf>, %515, %cst_109 [1] : vector<4x4xf32> to vector<4xf32>
    %517 = vector.shape_cast %516 : vector<4xf32> to vector<4x1xf32>
    %518 = arith.addf %514, %517 : vector<4x1xf32>
    %519 = vector.extract_strided_slice %506 {offsets = [0, 12], sizes = [4, 4], strides = [1, 1]} : vector<4x16xf32> to vector<4x4xf32>
    %cst_110 = arith.constant dense<0xFF800000> : vector<4xf32>
    %520 = vector.multi_reduction <maximumf>, %519, %cst_110 [1] : vector<4x4xf32> to vector<4xf32>
    %521 = vector.shape_cast %520 : vector<4xf32> to vector<4x1xf32>
    %522 = arith.addf %518, %521 : vector<4x1xf32>
    %523 = vector.extract_strided_slice %451 {offsets = [0, 192], sizes = [4, 64], strides = [1, 1]} : vector<4x256xf32> to vector<4x64xf32>
    %524 = vector.extract_strided_slice %523 {offsets = [0, 0], sizes = [4, 16], strides = [1, 1]} : vector<4x64xf32> to vector<4x16xf32>
    %525 = vector.extract_strided_slice %523 {offsets = [0, 16], sizes = [4, 16], strides = [1, 1]} : vector<4x64xf32> to vector<4x16xf32>
    %526 = arith.maximumf %524, %525 : vector<4x16xf32>
    %527 = vector.extract_strided_slice %523 {offsets = [0, 32], sizes = [4, 16], strides = [1, 1]} : vector<4x64xf32> to vector<4x16xf32>
    %528 = arith.maximumf %526, %527 : vector<4x16xf32>
    %529 = vector.extract_strided_slice %523 {offsets = [0, 48], sizes = [4, 16], strides = [1, 1]} : vector<4x64xf32> to vector<4x16xf32>
    %530 = arith.maximumf %528, %529 : vector<4x16xf32>
    %531 = vector.extract_strided_slice %530 {offsets = [0, 0], sizes = [4, 4], strides = [1, 1]} : vector<4x16xf32> to vector<4x4xf32>
    %cst_111 = arith.constant dense<0xFF800000> : vector<4xf32>
    %532 = vector.multi_reduction <maximumf>, %531, %cst_111 [1] : vector<4x4xf32> to vector<4xf32>
    %533 = vector.shape_cast %532 : vector<4xf32> to vector<4x1xf32>
    %534 = arith.addf %522, %533 : vector<4x1xf32>
    %535 = vector.extract_strided_slice %530 {offsets = [0, 4], sizes = [4, 4], strides = [1, 1]} : vector<4x16xf32> to vector<4x4xf32>
    %cst_112 = arith.constant dense<0xFF800000> : vector<4xf32>
    %536 = vector.multi_reduction <maximumf>, %535, %cst_112 [1] : vector<4x4xf32> to vector<4xf32>
    %537 = vector.shape_cast %536 : vector<4xf32> to vector<4x1xf32>
    %538 = arith.addf %534, %537 : vector<4x1xf32>
    %539 = vector.extract_strided_slice %530 {offsets = [0, 8], sizes = [4, 4], strides = [1, 1]} : vector<4x16xf32> to vector<4x4xf32>
    %cst_113 = arith.constant dense<0xFF800000> : vector<4xf32>
    %540 = vector.multi_reduction <maximumf>, %539, %cst_113 [1] : vector<4x4xf32> to vector<4xf32>
    %541 = vector.shape_cast %540 : vector<4xf32> to vector<4x1xf32>
    %542 = arith.addf %538, %541 : vector<4x1xf32>
    %543 = vector.extract_strided_slice %530 {offsets = [0, 12], sizes = [4, 4], strides = [1, 1]} : vector<4x16xf32> to vector<4x4xf32>
    %cst_114 = arith.constant dense<0xFF800000> : vector<4xf32>
    %544 = vector.multi_reduction <maximumf>, %543, %cst_114 [1] : vector<4x4xf32> to vector<4xf32>
    %545 = vector.shape_cast %544 : vector<4xf32> to vector<4x1xf32>
    %546 = arith.addf %542, %545 : vector<4x1xf32>
    %cst_115 = arith.constant 6.250000e-02 : f32
    %547 = vector.broadcast %cst_115 : f32 to vector<4x1xf32>
    %548 = arith.mulf %546, %547 : vector<4x1xf32>
    %549 = tpu.concatenate %248, %348, %448, %548 in 1 : vector<4x1xf32>, vector<4x1xf32>, vector<4x1xf32>, vector<4x1xf32> -> vector<4x4xf32>
    %c0_116 = arith.constant 0 : index
    %c0_117 = arith.constant 0 : index
    %c0_118 = arith.constant 0 : index
    %550 = vector.load %arg5[%c0_116, %c0_117, %c0_118] : memref<1x4x4xf32, #tpu.memory_space<vmem>>, vector<1x4x4xf32>
    %551 = vector.shape_cast %550 : vector<1x4x4xf32> to vector<4x4xf32>
    %552 = vector.shape_cast %549 : vector<4x4xf32> to vector<1x4x4xf32>
    tpu.vector_store %arg5[%c0_116, %c0_117, %c0_118], %552 {strides = array<i32>} : memref<1x4x4xf32, #tpu.memory_space<vmem>>, vector<1x4x4xf32>,
    return
  }
  func.func @transform_0(%arg0: i32, %arg1: i32) -> (i32, i32, i32, i32) {
    %c0_i32 = arith.constant 0 : i32
    %c0_i32_0 = arith.constant 0 : i32
    %c0_i32_1 = arith.constant 0 : i32
    return %arg0, %arg1, %c0_i32, %c0_i32_0 : i32, i32, i32, i32
  }
  func.func @transform_1(%arg0: i32, %arg1: i32) -> (i32, i32, i32) {
    %c0_i32 = arith.constant 0 : i32
    %c0_i32_0 = arith.constant 0 : i32
    return %arg0, %arg1, %c0_i32 : i32, i32, i32
  }
  func.func @transform_2(%arg0: i32, %arg1: i32) -> (i32, i32, i32) {
    %c0_i32 = arith.constant 0 : i32
    %c0_i32_0 = arith.constant 0 : i32
    return %arg0, %arg1, %c0_i32 : i32, i32, i32
  }
  func.func @transform_3(%arg0: i32, %arg1: i32) -> (i32, i32, i32) {
    %c0_i32 = arith.constant 0 : i32
    %c0_i32_0 = arith.constant 0 : i32
    return %arg0, %arg1, %c0_i32 : i32, i32, i32
  }
}

</mosaic_0001>

<llo_original>
// kernel: tpu_custom_call.1
$region0: #{tpu_custom_call.1}
  #allocation0 [shape = 'u32[]', space=smem, size = 0x4, offset = 0x4, fixed_abs, tag = 'smem constant byte address 0x4 - core index']
  #allocation1 [shape = 'u32[144,128]{1,0:T(1,128)}', space=vmem, size = 0x12000, scoped, tag = 'internal scratch']
  %s0 = inlined_call_operand.hbm [shape: f32[2,4,8,256], index: 0, kind: input, shape index: {}]
  %s1 = inlined_call_operand.vmem [shape: f32[2,4,1], index: 1, kind: output, shape index: {0}]
  %s2 = inlined_call_operand.vmem [shape: f32[2,4,2], index: 2, kind: output, shape index: {1}]
  %s3 = inlined_call_operand.hbm [shape: f32[2,4,4], index: 3, kind: output, shape index: {2}]
  %4 = xla_tuple %s1, %s2, %s3
  %s5 = sld [smem:[#allocation0]]
  $region57: #{tpu_custom_call.1} parent=0
    _
  %s7 = ssub.s32 1, %s5
  %s8 = scalar_select 0, %s7, %s5
  $region1: #{tpu_custom_call.1} parent=0
    #allocation2 [shape = 'u8[65536]{0}', space=vmem, size = 0x10000, scoped, tag = 'input window, operand 0']
    #allocation3 [shape = 's32[2]{0}', space=sflag, size = 0x8, scoped, tag = 'scoped memory for tpu_custom_call.1']
    #allocation4 [shape = 's32[2]{0}', space=sflag, size = 0x8, scoped, tag = 'scoped memory for tpu_custom_call.1']
    #allocation5 [shape = 'u8[4096]{0}', space=vmem, size = 0x1000, scoped, tag = 'output window, operand 2']
    %9 = vsyncpa [#allocation3], 0
    %s10 = scalar_lea.sflag [#allocation3], 1
    %11 = vsyncpa %s10, 0
    %12 = vsyncpa [#allocation4], 0
    %s13 = scalar_lea.sflag [#allocation4], 1
    %14 = vsyncpa %s13, 0
    loop: start=0, step=1, limit=4
    $region2: #{tpu_custom_call.1} parent=1 // loop_pre_header
      _
    $region3: #{tpu_custom_call.1} parent=1 // loop_header
      %s16 = sphi 0, %s20
      %p17 = scmp.ge.s32.totalorder %s16, 4
      %s23 = sphi 0, %s35
      %s24 = sphi 0, %s31
      %s25 = sphi 0, %s23
      %s26 = sphi 0, %s24
      %s27 = sphi 0, %s25
      %s28 = sphi 0, %s26
      %s40 = sphi 0, %s42
      %s43 = sphi 0, %s40
      %s44 = sphi 0, %s43
      %s60 = sphi 0, %s44
      %s68 = sphi 0, %s70
      %s71 = sphi 0, %s68
      %s72 = sphi 0, %s71
      %s88 = sphi 0, %s72
      %s96 = sphi 0, %s98
      %s99 = sphi 0, %s96
      %s100 = sphi 0, %s99
      %s116 = sphi 0, %s100
      %s124 = sphi 0, %s126
      %s127 = sphi 0, %s124
      %s128 = sphi 0, %s127
      %s144 = sphi 0, %s128
    $region4: #{tpu_custom_call.1} parent=1 // loop_header_branch
      %19 = sbr.rel (%p17) target = $region8
    $region5: #{tpu_custom_call.1} parent=1 // loop_body
      %s21 = ssub.s32 %s16, 1
      %s22 = ssub.s32 %s16, 2
      %s29 = sadd.s32 1, %s24
      %p30 = scmp.ge.s32.totalorder %s29, 1
      %s31 = scalar_select %p30, 0, %s29
      %s32 = sadd.s32 1, %s23
      %s33 = scalar_select %p30, %s32, %s23
      %p34 = scmp.ge.s32.totalorder %s33, 2
      %s35 = scalar_select %p34, 0, %s33
      %s36 = ssub.s32 %s23, %s35
      %s37 = ssub.s32 %s24, %s31
      %s38 = sor.u32 %s36, %s37
      %p39 = scmp.eq.s32.totalorder %s38, 0
      %s41 = sadd.s32 %s40, 1
      %s42 = scalar_select %p39, %s40, %s41
      %p45 = pneg %p39
      %p46 = scmp.eq.s32.totalorder %s16, 1
      %p47 = por %p45, %p46
      %p48 = scmp.ne.s32.totalorder %s40, %s43
      %p49 = scmp.eq.s32.totalorder %s16, 0
      %p50 = por %p48, %p49
      %p51 = scmp.ne.s32.totalorder %s40, %s43
      %p52 = scmp.eq.s32.totalorder %s21, 1
      %p53 = por %p51, %p52
      %p54 = scmp.ne.s32.totalorder %s43, %s44
      %p55 = scmp.eq.s32.totalorder %s21, 0
      %p56 = por %p54, %p55
      %p57 = scmp.ne.s32.totalorder %s43, %s44
      %p58 = scmp.eq.s32.totalorder %s22, 1
      %p59 = por %p57, %p58
      %p61 = scmp.ne.s32.totalorder %s44, %s60
      %p62 = scmp.eq.s32.totalorder %s22, 0
      %p63 = por %p61, %p62
      %s64 = ssub.s32 %s23, %s35
      %s65 = ssub.s32 %s24, %s31
      %s66 = sor.u32 %s64, %s65
      %p67 = scmp.eq.s32.totalorder %s66, 0
      %s69 = sadd.s32 %s68, 1
      %s70 = scalar_select %p67, %s68, %s69
      %p73 = pneg %p67
      %p74 = scmp.eq.s32.totalorder %s16, 1
      %p75 = por %p73, %p74
      %p76 = scmp.ne.s32.totalorder %s68, %s71
      %p77 = scmp.eq.s32.totalorder %s16, 0
      %p78 = por %p76, %p77
      %p79 = scmp.ne.s32.totalorder %s68, %s71
      %p80 = scmp.eq.s32.totalorder %s21, 1
      %p81 = por %p79, %p80
      %p82 = scmp.ne.s32.totalorder %s71, %s72
      %p83 = scmp.eq.s32.totalorder %s21, 0
      %p84 = por %p82, %p83
      %p85 = scmp.ne.s32.totalorder %s71, %s72
      %p86 = scmp.eq.s32.totalorder %s22, 1
      %p87 = por %p85, %p86
      %p89 = scmp.ne.s32.totalorder %s72, %s88
      %p90 = scmp.eq.s32.totalorder %s22, 0
      %p91 = por %p89, %p90
      %s92 = ssub.s32 %s23, %s35
      %s93 = ssub.s32 %s24, %s31
      %s94 = sor.u32 %s92, %s93
      %p95 = scmp.eq.s32.totalorder %s94, 0
      %s97 = sadd.s32 %s96, 1
      %s98 = scalar_select %p95, %s96, %s97
      %p101 = pneg %p95
      %p102 = scmp.eq.s32.totalorder %s16, 1
      %p103 = por %p101, %p102
      %p104 = scmp.ne.s32.totalorder %s96, %s99
      %p105 = scmp.eq.s32.totalorder %s16, 0
      %p106 = por %p104, %p105
      %p107 = scmp.ne.s32.totalorder %s96, %s99
      %p108 = scmp.eq.s32.totalorder %s21, 1
      %p109 = por %p107, %p108
      %p110 = scmp.ne.s32.totalorder %s99, %s100
      %p111 = scmp.eq.s32.totalorder %s21, 0
      %p112 = por %p110, %p111
      %p113 = scmp.ne.s32.totalorder %s99, %s100
      %p114 = scmp.eq.s32.totalorder %s22, 1
      %p115 = por %p113, %p114
      %p117 = scmp.ne.s32.totalorder %s100, %s116
      %p118 = scmp.eq.s32.totalorder %s22, 0
      %p119 = por %p117, %p118
      %s120 = ssub.s32 %s23, %s35
      %s121 = ssub.s32 %s24, %s31
      %s122 = sor.u32 %s120, %s121
      %p123 = scmp.eq.s32.totalorder %s122, 0
      %s125 = sadd.s32 %s124, 1
      %s126 = scalar_select %p123, %s124, %s125
      %p129 = pneg %p123
      %p130 = scmp.eq.s32.totalorder %s16, 1
      %p131 = por %p129, %p130
      %p132 = scmp.ne.s32.totalorder %s124, %s127
      %p133 = scmp.eq.s32.totalorder %s16, 0
      %p134 = por %p132, %p133
      %p135 = scmp.ne.s32.totalorder %s124, %s127
      %p136 = scmp.eq.s32.totalorder %s21, 1
      %p137 = por %p135, %p136
      %p138 = scmp.ne.s32.totalorder %s127, %s128
      %p139 = scmp.eq.s32.totalorder %s21, 0
      %p140 = por %p138, %p139
      %p141 = scmp.ne.s32.totalorder %s127, %s128
      %p142 = scmp.eq.s32.totalorder %s22, 1
      %p143 = por %p141, %p142
      %p145 = scmp.ne.s32.totalorder %s128, %s144
      %p146 = scmp.eq.s32.totalorder %s22, 0
      %p147 = por %p145, %p146
      %p148 = scmp.le.s32.totalorder 1, %s16
      %p149 = scmp.lt.s32.totalorder %s16, 3
      %p150 = pnand %p148, %p149
      %p151 = pneg %p150
      // Predicated region
      $region9: #{tpu_custom_call.1} parent=5 // pred_check
        _
      $region10: #{tpu_custom_call.1} parent=5 // pred_check_branch
        %153 = sbr.rel (%p150) target = $region12
      $region11: #{tpu_custom_call.1} parent=5 // pred_region
        %s154 = ssub.s32 %s16, 1
      $region12: #{tpu_custom_call.1} parent=5 // pred_fallthru
        _
      %p155 = scmp.lt.s32.totalorder %s16, 2
      // Predicated region
      $region13: #{tpu_custom_call.1} parent=5 // pred_check
        %p156 = pneg %p155
      $region14: #{tpu_custom_call.1} parent=5 // pred_check_branch
        %158 = sbr.rel (%p156) target = $region16
      $region15: #{tpu_custom_call.1} parent=5 // pred_region
        // Predicated region
        $region17: #{tpu_custom_call.1} parent=15 // pred_check
          %p159 = pneg %p50
        $region18: #{tpu_custom_call.1} parent=15 // pred_check_branch
          %161 = sbr.rel (%p159) target = $region20
        $region19: #{tpu_custom_call.1} parent=15 // pred_region
          %s162 = sand.u32 %s40, 1
          %s163 = scalar_lea.sflag [#allocation3], %s162
          %s164 = sand.u32 %s40, 1
          %s165 = smul.addr %s164, 64
          %s166 = scalar_lea.vmem [#allocation2], %s165
          %s167 = smul.u32 4, %s24
          %s169 = ssub.s32 1024, 1024
          %170 = vsyncadd %s163, %s169
          %s171 = smul.addr %s167, 2
          %s172 = smul.addr %s23, 8
          %s173 = sadd.s32 %s171, %s172
          %s174 = smul.addr %s173, 128
          %s175 = scalar_lea.hbm %s0, %s174
          %s176 = sshll.u32 %s166, 4
          %s177 = int_to_ptr.vmem [resolvable:$true] %s176
          %182 = dma.hbm_to_vmem [thread:$0]  %s175, 1024, %s177, %s163, 256, 256, 16
        $region20: #{tpu_custom_call.1} parent=15 // pred_fallthru
          _
      $region16: #{tpu_custom_call.1} parent=5 // pred_fallthru
        _
      %p183 = scmp.le.s32.totalorder 1, %s16
      %p184 = scmp.lt.s32.totalorder %s16, 3
      %p185 = pnand %p183, %p184
      %p186 = pneg %p185
      // Predicated region
      $region21: #{tpu_custom_call.1} parent=5 // pred_check
        _
      $region22: #{tpu_custom_call.1} parent=5 // pred_check_branch
        %188 = sbr.rel (%p185) target = $region24
      $region23: #{tpu_custom_call.1} parent=5 // pred_region
        %s189 = ssub.s32 %s16, 1
        %s190 = sand.u32 %s43, 1
        %s191 = scalar_lea.sflag [#allocation3], %s190
        %s192 = sand.u32 %s43, 1
        %s193 = smul.addr %s192, 64
        %s194 = scalar_lea.vmem [#allocation2], %s193
        // Predicated region
        $region25: #{tpu_custom_call.1} parent=23 // pred_check
          %p195 = pneg %p56
        $region26: #{tpu_custom_call.1} parent=23 // pred_check_branch
          %197 = sbr.rel (%p195) target = $region28
        $region27: #{tpu_custom_call.1} parent=23 // pred_region
          %198 = dma.done %s191, 1024
        $region28: #{tpu_custom_call.1} parent=23 // pred_fallthru
          _
        %s199 = sand.u32 %s43, 1
        %s200 = scalar_lea.sflag [#allocation3], %s199
        %s201 = sand.u32 %s43, 1
        %s202 = smul.addr %s201, 64
        %s203 = scalar_lea.vmem [#allocation2], %s202
        %p204 = pneg %p56
        %p205 = pneg %p53
        %p206 = pneg %p84
        %p207 = pneg %p81
        %p208 = scmp.lt.s32.totalorder %s25, 1
        %s209 = scalar_select %p208, %s25, 1
        %p210 = scmp.lt.s32.totalorder %s26, 0
        %s211 = scalar_select %p210, %s26, 0
        %s212 = sadd.s32 %s211, %s209
        %s213 = smul.addr %s212, 4
        %s214 = scalar_lea.vmem %s1, %s213
        %p215 = pneg %p112
        %p216 = pneg %p109
        %p217 = scmp.lt.s32.totalorder %s25, 1
        %s218 = scalar_select %p217, %s25, 1
        %p219 = scmp.lt.s32.totalorder %s26, 0
        %s220 = scalar_select %p219, %s26, 0
        %s221 = sadd.s32 %s220, %s218
        %s222 = smul.addr %s221, 4
        %s223 = scalar_lea.vmem %s2, %s222
        %p224 = pneg %p140
        %p225 = pneg %p137
        %s226 = sand.u32 %s127, 1
        %s227 = scalar_lea.sflag [#allocation4], %s226
        %s228 = sand.u32 %s127, 1
        %s229 = smul.addr %s228, 4
        %s230 = scalar_lea.vmem [#allocation5], %s229
        %s231 = smul.u32 4, %s26
        %p232 = scmp.lt.s32.totalorder %s25, 1
        %s233 = scalar_select %p232, %s25, 1
        %p234 = scmp.lt.s32.totalorder %s26, 0
        %s235 = scalar_select %p234, %s26, 0
        %s236 = sadd.s32 %s235, %s233
        %s237 = smul.addr %s236, 4
        %s238 = scalar_lea.vmem %s1, %s237
        %p239 = scmp.lt.s32.totalorder %s25, 1
        %s240 = scalar_select %p239, %s25, 1
        %p241 = scmp.lt.s32.totalorder %s26, 0
        %s242 = scalar_select %p241, %s26, 0
        %s243 = sadd.s32 %s242, %s240
        %s244 = smul.addr %s243, 4
        %s245 = scalar_lea.vmem %s2, %s244
        %v246 = vld [vmem:[%s194] sm:$0xff]
        %v247 = vld [vmem:[%s194 + $0x8] sm:$0xff]
        %v248 = vld [vmem:[%s194 + $0x10] sm:$0xff]
        %v249 = vld [vmem:[%s194 + $0x18] sm:$0xff]
        %v250 = vld [vmem:[%s194 + $0x20] sm:$0xff]
        %v251 = vld [vmem:[%s194 + $0x28] sm:$0xff]
        %v252 = vld [vmem:[%s194 + $0x30] sm:$0xff]
        %v253 = vld [vmem:[%s194 + $0x38] sm:$0xff]
        %v254 = vrot.slane %v246, 4
        %v255 = vmax.f32 %v246, %v254
        %v256 = vrot.slane %v255, 2
        %v257 = vmax.f32 %v255, %v256
        %v258 = vrot.slane %v257, 1
        %v259 = vmax.f32 %v257, %v258
        %v260 = vrot.slane %v247, 4
        %v261 = vmax.f32 %v247, %v260
        %v262 = vrot.slane %v261, 2
        %v263 = vmax.f32 %v261, %v262
        %v264 = vrot.slane %v263, 1
        %v265 = vmax.f32 %v263, %v264
        %v266 = vrot.slane %v248, 4
        %v267 = vmax.f32 %v248, %v266
        %v268 = vrot.slane %v267, 2
        %v269 = vmax.f32 %v267, %v268
        %v270 = vrot.slane %v269, 1
        %v271 = vmax.f32 %v269, %v270
        %v272 = vrot.slane %v249, 4
        %v273 = vmax.f32 %v249, %v272
        %v274 = vrot.slane %v273, 2
        %v275 = vmax.f32 %v273, %v274
        %v276 = vrot.slane %v275, 1
        %v277 = vmax.f32 %v275, %v276
        %v278 = vrot.slane %v250, 4
        %v279 = vmax.f32 %v250, %v278
        %v280 = vrot.slane %v279, 2
        %v281 = vmax.f32 %v279, %v280
        %v282 = vrot.slane %v281, 1
        %v283 = vmax.f32 %v281, %v282
        %v284 = vrot.slane %v251, 4
        %v285 = vmax.f32 %v251, %v284
        %v286 = vrot.slane %v285, 2
        %v287 = vmax.f32 %v285, %v286
        %v288 = vrot.slane %v287, 1
        %v289 = vmax.f32 %v287, %v288
        %v290 = vrot.slane %v252, 4
        %v291 = vmax.f32 %v252, %v290
        %v292 = vrot.slane %v291, 2
        %v293 = vmax.f32 %v291, %v292
        %v294 = vrot.slane %v293, 1
        %v295 = vmax.f32 %v293, %v294
        %v296 = vrot.slane %v253, 4
        %v297 = vmax.f32 %v253, %v296
        %v298 = vrot.slane %v297, 2
        %v299 = vmax.f32 %v297, %v298
        %v300 = vrot.slane %v299, 1
        %v301 = vmax.f32 %v299, %v300
        %306 = vrot.lane.b32.xlu0 %v259, 112
        %v307 = vpop.permute.xlu0 %306
        %308 = vrot.lane.b32.xlu0 %v271, 112
        %v309 = vpop.permute.xlu0 %308
        %310 = vrot.lane.b32.xlu0 %v283, 112
        %v311 = vpop.permute.xlu0 %310
        %312 = vrot.lane.b32.xlu0 %v295, 112
        %v313 = vpop.permute.xlu0 %312
        %v318 = vmax.f32 %v259, %v307
        %v319 = vmax.f32 %v271, %v309
        %v320 = vmax.f32 %v283, %v311
        %v321 = vmax.f32 %v295, %v313
        %322 = vrot.lane.b32.xlu0 %v259, 96
        %v323 = vpop.permute.xlu0 %322
        %324 = vrot.lane.b32.xlu0 %v271, 96
        %v325 = vpop.permute.xlu0 %324
        %326 = vrot.lane.b32.xlu0 %v283, 96
        %v327 = vpop.permute.xlu0 %326
        %328 = vrot.lane.b32.xlu0 %v295, 96
        %v329 = vpop.permute.xlu0 %328
        %v334 = vmax.f32 %v318, %v323
        %v335 = vmax.f32 %v319, %v325
        %v336 = vmax.f32 %v320, %v327
        %v337 = vmax.f32 %v321, %v329
        %338 = vrot.lane.b32.xlu0 %v259, 80
        %v339 = vpop.permute.xlu0 %338
        %340 = vrot.lane.b32.xlu0 %v271, 80
        %v341 = vpop.permute.xlu0 %340
        %342 = vrot.lane.b32.xlu0 %v283, 80
        %v343 = vpop.permute.xlu0 %342
        %344 = vrot.lane.b32.xlu0 %v295, 80
        %v345 = vpop.permute.xlu0 %344
        %v350 = vmax.f32 %v334, %v339
        %v351 = vmax.f32 %v335, %v341
        %v352 = vmax.f32 %v336, %v343
        %v353 = vmax.f32 %v337, %v345
        %354 = vrot.lane.b32.xlu0 %v259, 64
        %v355 = vpop.permute.xlu0 %354
        %356 = vrot.lane.b32.xlu0 %v271, 64
        %v357 = vpop.permute.xlu0 %356
        %358 = vrot.lane.b32.xlu0 %v283, 64
        %v359 = vpop.permute.xlu0 %358
        %360 = vrot.lane.b32.xlu0 %v295, 64
        %v361 = vpop.permute.xlu0 %360
        %v366 = vmax.f32 %v350, %v355
        %v367 = vmax.f32 %v351, %v357
        %v368 = vmax.f32 %v352, %v359
        %v369 = vmax.f32 %v353, %v361
        %370 = vrot.lane.b32.xlu0 %v259, 48
        %v371 = vpop.permute.xlu0 %370
        %372 = vrot.lane.b32.xlu0 %v271, 48
        %v373 = vpop.permute.xlu0 %372
        %374 = vrot.lane.b32.xlu0 %v283, 48
        %v375 = vpop.permute.xlu0 %374
        %376 = vrot.lane.b32.xlu0 %v295, 48
        %v377 = vpop.permute.xlu0 %376
        %v382 = vmax.f32 %v366, %v371
        %v383 = vmax.f32 %v367, %v373
        %v384 = vmax.f32 %v368, %v375
        %v385 = vmax.f32 %v369, %v377
        %386 = vrot.lane.b32.xlu0 %v259, 32
        %v387 = vpop.permute.xlu0 %386
        %388 = vrot.lane.b32.xlu0 %v271, 32
        %v389 = vpop.permute.xlu0 %388
        %390 = vrot.lane.b32.xlu0 %v283, 32
        %v391 = vpop.permute.xlu0 %390
        %392 = vrot.lane.b32.xlu0 %v295, 32
        %v393 = vpop.permute.xlu0 %392
        %v398 = vmax.f32 %v382, %v387
        %v399 = vmax.f32 %v383, %v389
        %v400 = vmax.f32 %v384, %v391
        %v401 = vmax.f32 %v385, %v393
        %402 = vrot.lane.b32.xlu0 %v259, 16
        %v403 = vpop.permute.xlu0 %402
        %404 = vrot.lane.b32.xlu0 %v271, 16
        %v405 = vpop.permute.xlu0 %404
        %406 = vrot.lane.b32.xlu0 %v283, 16
        %v407 = vpop.permute.xlu0 %406
        %408 = vrot.lane.b32.xlu0 %v295, 16
        %v409 = vpop.permute.xlu0 %408
        %v414 = vmax.f32 %v398, %v403
        %v415 = vmax.f32 %v399, %v405
        %v416 = vmax.f32 %v400, %v407
        %v417 = vmax.f32 %v401, %v409
        %v418 = vmax.f32 %v414, %v265
        %v419 = vmax.f32 %v415, %v277
        %v420 = vmax.f32 %v416, %v289
        %v421 = vmax.f32 %v417, %v301
        %426 = vrot.lane.b32.xlu0 %v265, 112
        %v427 = vpop.permute.xlu0 %426
        %428 = vrot.lane.b32.xlu0 %v277, 112
        %v429 = vpop.permute.xlu0 %428
        %430 = vrot.lane.b32.xlu0 %v289, 112
        %v431 = vpop.permute.xlu0 %430
        %432 = vrot.lane.b32.xlu0 %v301, 112
        %v433 = vpop.permute.xlu0 %432
        %v438 = vmax.f32 %v418, %v427
        %v439 = vmax.f32 %v419, %v429
        %v440 = vmax.f32 %v420, %v431
        %v441 = vmax.f32 %v421, %v433
        %442 = vrot.lane.b32.xlu0 %v265, 96
        %v443 = vpop.permute.xlu0 %442
        %444 = vrot.lane.b32.xlu0 %v277, 96
        %v445 = vpop.permute.xlu0 %444
        %446 = vrot.lane.b32.xlu0 %v289, 96
        %v447 = vpop.permute.xlu0 %446
        %448 = vrot.lane.b32.xlu0 %v301, 96
        %v449 = vpop.permute.xlu0 %448
        %v454 = vmax.f32 %v438, %v443
        %v455 = vmax.f32 %v439, %v445
        %v456 = vmax.f32 %v440, %v447
        %v457 = vmax.f32 %v441, %v449
        %458 = vrot.lane.b32.xlu0 %v265, 80
        %v459 = vpop.permute.xlu0 %458
        %460 = vrot.lane.b32.xlu0 %v277, 80
        %v461 = vpop.permute.xlu0 %460
        %462 = vrot.lane.b32.xlu0 %v289, 80
        %v463 = vpop.permute.xlu0 %462
        %464 = vrot.lane.b32.xlu0 %v301, 80
        %v465 = vpop.permute.xlu0 %464
        %v470 = vmax.f32 %v454, %v459
        %v471 = vmax.f32 %v455, %v461
        %v472 = vmax.f32 %v456, %v463
        %v473 = vmax.f32 %v457, %v465
        %474 = vrot.lane.b32.xlu0 %v265, 64
        %v475 = vpop.permute.xlu0 %474
        %476 = vrot.lane.b32.xlu0 %v277, 64
        %v477 = vpop.permute.xlu0 %476
        %478 = vrot.lane.b32.xlu0 %v289, 64
        %v479 = vpop.permute.xlu0 %478
        %480 = vrot.lane.b32.xlu0 %v301, 64
        %v481 = vpop.permute.xlu0 %480
        %v486 = vmax.f32 %v470, %v475
        %v487 = vmax.f32 %v471, %v477
        %v488 = vmax.f32 %v472, %v479
        %v489 = vmax.f32 %v473, %v481
        %490 = vrot.lane.b32.xlu0 %v265, 48
        %v491 = vpop.permute.xlu0 %490
        %492 = vrot.lane.b32.xlu0 %v277, 48
        %v493 = vpop.permute.xlu0 %492
        %494 = vrot.lane.b32.xlu0 %v289, 48
        %v495 = vpop.permute.xlu0 %494
        %496 = vrot.lane.b32.xlu0 %v301, 48
        %v497 = vpop.permute.xlu0 %496
        %v502 = vmax.f32 %v486, %v491
        %v503 = vmax.f32 %v487, %v493
        %v504 = vmax.f32 %v488, %v495
        %v505 = vmax.f32 %v489, %v497
        %506 = vrot.lane.b32.xlu0 %v265, 32
        %v507 = vpop.permute.xlu0 %506
        %508 = vrot.lane.b32.xlu0 %v277, 32
        %v509 = vpop.permute.xlu0 %508
        %510 = vrot.lane.b32.xlu0 %v289, 32
        %v511 = vpop.permute.xlu0 %510
        %512 = vrot.lane.b32.xlu0 %v301, 32
        %v513 = vpop.permute.xlu0 %512
        %v518 = vmax.f32 %v502, %v507
        %v519 = vmax.f32 %v503, %v509
        %v520 = vmax.f32 %v504, %v511
        %v521 = vmax.f32 %v505, %v513
        %522 = vrot.lane.b32.xlu0 %v265, 16
        %v523 = vpop.permute.xlu0 %522
        %524 = vrot.lane.b32.xlu0 %v277, 16
        %v525 = vpop.permute.xlu0 %524
        %526 = vrot.lane.b32.xlu0 %v289, 16
        %v527 = vpop.permute.xlu0 %526
        %528 = vrot.lane.b32.xlu0 %v301, 16
        %v529 = vpop.permute.xlu0 %528
        %v534 = vmax.f32 %v518, %v523
        %v535 = vmax.f32 %v519, %v525
        %v536 = vmax.f32 %v520, %v527
        %v537 = vmax.f32 %v521, %v529
        %v542 = vrot.slane %v535, 7
        %vm543 = vcmask 1041409
        %v544 = vsel %vm543, %v542, %v534
        %v545 = vrot.slane %v536, 6
        %vm546 = vcmask 1042434
        %v547 = vsel %vm546, %v545, %v544
        %v548 = vrot.slane %v537, 5
        %vm549 = vcmask 1043459
        %v550 = vsel %vm549, %v548, %v547
        %vm552 = vcmask 125952
        %v553 = vsel %vm552, %v550, -inf
        %554 = vmax.xlane.f32.xlu0 %v553
        %v555 = vpop.xlane.xlu0 %554
        %vm556 = vcmask 3072
        %557 = vst.msk [vmem:[%s238] sm:$0xf] %vm556, %v555
        %v558 = vld [vmem:[%s194] sm:$0xf]
        %v559 = vld [vmem:[%s194 + $0x8] sm:$0xf]
        %v560 = vld [vmem:[%s194 + $0x10] sm:$0xf]
        %v561 = vld [vmem:[%s194 + $0x18] sm:$0xf]
        %v562 = vld [vmem:[%s194 + $0x20] sm:$0xf]
        %v563 = vld [vmem:[%s194 + $0x28] sm:$0xf]
        %v564 = vld [vmem:[%s194 + $0x30] sm:$0xf]
        %v565 = vld [vmem:[%s194 + $0x38] sm:$0xf]
        %vm566 = vcmask 1043456
        %v567 = vsel %vm566, %v558, -inf
        %v568 = vrot.slane %v567, 4
        %v569 = vmax.f32 %v567, %v568
        %v570 = vrot.slane %v569, 2
        %v571 = vmax.f32 %v569, %v570
        %v572 = vrot.slane %v571, 1
        %v573 = vmax.f32 %v571, %v572
        %v574 = vsel %vm566, %v559, -inf
        %v575 = vrot.slane %v574, 4
        %v576 = vmax.f32 %v574, %v575
        %v577 = vrot.slane %v576, 2
        %v578 = vmax.f32 %v576, %v577
        %v579 = vrot.slane %v578, 1
        %v580 = vmax.f32 %v578, %v579
        %v581 = vsel %vm566, %v560, -inf
        %v582 = vrot.slane %v581, 4
        %v583 = vmax.f32 %v581, %v582
        %v584 = vrot.slane %v583, 2
        %v585 = vmax.f32 %v583, %v584
        %v586 = vrot.slane %v585, 1
        %v587 = vmax.f32 %v585, %v586
        %v588 = vsel %vm566, %v561, -inf
        %v589 = vrot.slane %v588, 4
        %v590 = vmax.f32 %v588, %v589
        %v591 = vrot.slane %v590, 2
        %v592 = vmax.f32 %v590, %v591
        %v593 = vrot.slane %v592, 1
        %v594 = vmax.f32 %v592, %v593
        %v595 = vsel %vm566, %v562, -inf
        %v596 = vrot.slane %v595, 4
        %v597 = vmax.f32 %v595, %v596
        %v598 = vrot.slane %v597, 2
        %v599 = vmax.f32 %v597, %v598
        %v600 = vrot.slane %v599, 1
        %v601 = vmax.f32 %v599, %v600
        %v602 = vsel %vm566, %v563, -inf
        %v603 = vrot.slane %v602, 4
        %v604 = vmax.f32 %v602, %v603
        %v605 = vrot.slane %v604, 2
        %v606 = vmax.f32 %v604, %v605
        %v607 = vrot.slane %v606, 1
        %v608 = vmax.f32 %v606, %v607
        %v609 = vsel %vm566, %v564, -inf
        %v610 = vrot.slane %v609, 4
        %v611 = vmax.f32 %v609, %v610
        %v612 = vrot.slane %v611, 2
        %v613 = vmax.f32 %v611, %v612
        %v614 = vrot.slane %v613, 1
        %v615 = vmax.f32 %v613, %v614
        %v616 = vsel %vm566, %v565, -inf
        %v617 = vrot.slane %v616, 4
        %v618 = vmax.f32 %v616, %v617
        %v619 = vrot.slane %v618, 2
        %v620 = vmax.f32 %v618, %v619
        %v621 = vrot.slane %v620, 1
        %v622 = vmax.f32 %v620, %v621
        %627 = vrot.lane.b32.xlu0 %v573, 112
        %v628 = vpop.permute.xlu0 %627
        %629 = vrot.lane.b32.xlu0 %v587, 112
        %v630 = vpop.permute.xlu0 %629
        %631 = vrot.lane.b32.xlu0 %v601, 112
        %v632 = vpop.permute.xlu0 %631
        %633 = vrot.lane.b32.xlu0 %v615, 112
        %v634 = vpop.permute.xlu0 %633
        %v639 = vmax.f32 %v573, %v628
        %v640 = vmax.f32 %v587, %v630
        %v641 = vmax.f32 %v601, %v632
        %v642 = vmax.f32 %v615, %v634
        %643 = vrot.lane.b32.xlu0 %v573, 96
        %v644 = vpop.permute.xlu0 %643
        %645 = vrot.lane.b32.xlu0 %v587, 96
        %v646 = vpop.permute.xlu0 %645
        %647 = vrot.lane.b32.xlu0 %v601, 96
        %v648 = vpop.permute.xlu0 %647
        %649 = vrot.lane.b32.xlu0 %v615, 96
        %v650 = vpop.permute.xlu0 %649
        %v655 = vmax.f32 %v639, %v644
        %v656 = vmax.f32 %v640, %v646
        %v657 = vmax.f32 %v641, %v648
        %v658 = vmax.f32 %v642, %v650
        %659 = vrot.lane.b32.xlu0 %v573, 80
        %v660 = vpop.permute.xlu0 %659
        %661 = vrot.lane.b32.xlu0 %v587, 80
        %v662 = vpop.permute.xlu0 %661
        %663 = vrot.lane.b32.xlu0 %v601, 80
        %v664 = vpop.permute.xlu0 %663
        %665 = vrot.lane.b32.xlu0 %v615, 80
        %v666 = vpop.permute.xlu0 %665
        %v671 = vmax.f32 %v655, %v660
        %v672 = vmax.f32 %v656, %v662
        %v673 = vmax.f32 %v657, %v664
        %v674 = vmax.f32 %v658, %v666
        %675 = vrot.lane.b32.xlu0 %v573, 64
        %v676 = vpop.permute.xlu0 %675
        %677 = vrot.lane.b32.xlu0 %v587, 64
        %v678 = vpop.permute.xlu0 %677
        %679 = vrot.lane.b32.xlu0 %v601, 64
        %v680 = vpop.permute.xlu0 %679
        %681 = vrot.lane.b32.xlu0 %v615, 64
        %v682 = vpop.permute.xlu0 %681
        %v687 = vmax.f32 %v671, %v676
        %v688 = vmax.f32 %v672, %v678
        %v689 = vmax.f32 %v673, %v680
        %v690 = vmax.f32 %v674, %v682
        %691 = vrot.lane.b32.xlu0 %v573, 48
        %v692 = vpop.permute.xlu0 %691
        %693 = vrot.lane.b32.xlu0 %v587, 48
        %v694 = vpop.permute.xlu0 %693
        %695 = vrot.lane.b32.xlu0 %v601, 48
        %v696 = vpop.permute.xlu0 %695
        %697 = vrot.lane.b32.xlu0 %v615, 48
        %v698 = vpop.permute.xlu0 %697
        %v703 = vmax.f32 %v687, %v692
        %v704 = vmax.f32 %v688, %v694
        %v705 = vmax.f32 %v689, %v696
        %v706 = vmax.f32 %v690, %v698
        %707 = vrot.lane.b32.xlu0 %v573, 32
        %v708 = vpop.permute.xlu0 %707
        %709 = vrot.lane.b32.xlu0 %v587, 32
        %v710 = vpop.permute.xlu0 %709
        %711 = vrot.lane.b32.xlu0 %v601, 32
        %v712 = vpop.permute.xlu0 %711
        %713 = vrot.lane.b32.xlu0 %v615, 32
        %v714 = vpop.permute.xlu0 %713
        %v719 = vmax.f32 %v703, %v708
        %v720 = vmax.f32 %v704, %v710
        %v721 = vmax.f32 %v705, %v712
        %v722 = vmax.f32 %v706, %v714
        %723 = vrot.lane.b32.xlu0 %v573, 16
        %v724 = vpop.permute.xlu0 %723
        %725 = vrot.lane.b32.xlu0 %v587, 16
        %v726 = vpop.permute.xlu0 %725
        %727 = vrot.lane.b32.xlu0 %v601, 16
        %v728 = vpop.permute.xlu0 %727
        %729 = vrot.lane.b32.xlu0 %v615, 16
        %v730 = vpop.permute.xlu0 %729
        %v735 = vmax.f32 %v719, %v724
        %v736 = vmax.f32 %v720, %v726
        %v737 = vmax.f32 %v721, %v728
        %v738 = vmax.f32 %v722, %v730
        %v743 = vrot.slane %v736, 7
        %v744 = vsel %vm543, %v743, %v735
        %v745 = vrot.slane %v737, 6
        %v746 = vsel %vm546, %v745, %v744
        %v747 = vrot.slane %v738, 5
        %v748 = vsel %vm549, %v747, %v746
        %vm750 = vcmask 60416
        %v751 = vsel %vm750, %v748, -inf
        %752 = vmax.xlane.f32.xlu0 %v751
        %v753 = vpop.xlane.xlu0 %752
        %vm754 = vcmask 126016
        %v755 = vsel %vm754, %v748, -inf
        %756 = vmax.xlane.f32.xlu0 %v755
        %v757 = vpop.xlane.xlu0 %756
        %v758 = vadd.f32 %v753, %v757
        %763 = vrot.lane.b32.xlu0 %v580, 112
        %v764 = vpop.permute.xlu0 %763
        %765 = vrot.lane.b32.xlu0 %v594, 112
        %v766 = vpop.permute.xlu0 %765
        %767 = vrot.lane.b32.xlu0 %v608, 112
        %v768 = vpop.permute.xlu0 %767
        %769 = vrot.lane.b32.xlu0 %v622, 112
        %v770 = vpop.permute.xlu0 %769
        %v775 = vmax.f32 %v580, %v764
        %v776 = vmax.f32 %v594, %v766
        %v777 = vmax.f32 %v608, %v768
        %v778 = vmax.f32 %v622, %v770
        %779 = vrot.lane.b32.xlu0 %v580, 96
        %v780 = vpop.permute.xlu0 %779
        %781 = vrot.lane.b32.xlu0 %v594, 96
        %v782 = vpop.permute.xlu0 %781
        %783 = vrot.lane.b32.xlu0 %v608, 96
        %v784 = vpop.permute.xlu0 %783
        %785 = vrot.lane.b32.xlu0 %v622, 96
        %v786 = vpop.permute.xlu0 %785
        %v791 = vmax.f32 %v775, %v780
        %v792 = vmax.f32 %v776, %v782
        %v793 = vmax.f32 %v777, %v784
        %v794 = vmax.f32 %v778, %v786
        %795 = vrot.lane.b32.xlu0 %v580, 80
        %v796 = vpop.permute.xlu0 %795
        %797 = vrot.lane.b32.xlu0 %v594, 80
        %v798 = vpop.permute.xlu0 %797
        %799 = vrot.lane.b32.xlu0 %v608, 80
        %v800 = vpop.permute.xlu0 %799
        %801 = vrot.lane.b32.xlu0 %v622, 80
        %v802 = vpop.permute.xlu0 %801
        %v807 = vmax.f32 %v791, %v796
        %v808 = vmax.f32 %v792, %v798
        %v809 = vmax.f32 %v793, %v800
        %v810 = vmax.f32 %v794, %v802
        %811 = vrot.lane.b32.xlu0 %v580, 64
        %v812 = vpop.permute.xlu0 %811
        %813 = vrot.lane.b32.xlu0 %v594, 64
        %v814 = vpop.permute.xlu0 %813
        %815 = vrot.lane.b32.xlu0 %v608, 64
        %v816 = vpop.permute.xlu0 %815
        %817 = vrot.lane.b32.xlu0 %v622, 64
        %v818 = vpop.permute.xlu0 %817
        %v823 = vmax.f32 %v807, %v812
        %v824 = vmax.f32 %v808, %v814
        %v825 = vmax.f32 %v809, %v816
        %v826 = vmax.f32 %v810, %v818
        %827 = vrot.lane.b32.xlu0 %v580, 48
        %v828 = vpop.permute.xlu0 %827
        %829 = vrot.lane.b32.xlu0 %v594, 48
        %v830 = vpop.permute.xlu0 %829
        %831 = vrot.lane.b32.xlu0 %v608, 48
        %v832 = vpop.permute.xlu0 %831
        %833 = vrot.lane.b32.xlu0 %v622, 48
        %v834 = vpop.permute.xlu0 %833
        %v839 = vmax.f32 %v823, %v828
        %v840 = vmax.f32 %v824, %v830
        %v841 = vmax.f32 %v825, %v832
        %v842 = vmax.f32 %v826, %v834
        %843 = vrot.lane.b32.xlu0 %v580, 32
        %v844 = vpop.permute.xlu0 %843
        %845 = vrot.lane.b32.xlu0 %v594, 32
        %v846 = vpop.permute.xlu0 %845
        %847 = vrot.lane.b32.xlu0 %v608, 32
        %v848 = vpop.permute.xlu0 %847
        %849 = vrot.lane.b32.xlu0 %v622, 32
        %v850 = vpop.permute.xlu0 %849
        %v855 = vmax.f32 %v839, %v844
        %v856 = vmax.f32 %v840, %v846
        %v857 = vmax.f32 %v841, %v848
        %v858 = vmax.f32 %v842, %v850
        %859 = vrot.lane.b32.xlu0 %v580, 16
        %v860 = vpop.permute.xlu0 %859
        %861 = vrot.lane.b32.xlu0 %v594, 16
        %v862 = vpop.permute.xlu0 %861
        %863 = vrot.lane.b32.xlu0 %v608, 16
        %v864 = vpop.permute.xlu0 %863
        %865 = vrot.lane.b32.xlu0 %v622, 16
        %v866 = vpop.permute.xlu0 %865
        %v871 = vmax.f32 %v855, %v860
        %v872 = vmax.f32 %v856, %v862
        %v873 = vmax.f32 %v857, %v864
        %v874 = vmax.f32 %v858, %v866
        %v879 = vrot.slane %v872, 7
        %v880 = vsel %vm543, %v879, %v871
        %v881 = vrot.slane %v873, 6
        %v882 = vsel %vm546, %v881, %v880
        %v883 = vrot.slane %v874, 5
        %v884 = vsel %vm549, %v883, %v882
        %v886 = vsel %vm750, %v884, -inf
        %887 = vmax.xlane.f32.xlu0 %v886
        %v888 = vpop.xlane.xlu0 %887
        %v889 = vadd.f32 %v758, %v888
        %v890 = vsel %vm754, %v884, -inf
        %891 = vmax.xlane.f32.xlu0 %v890
        %v892 = vpop.xlane.xlu0 %891
        %v893 = vadd.f32 %v889, %v892
        %v894 = vmul.f32 %v893, 0.25
        %v895 = vld [vmem:[%s194] sm:$0xf0]
        %v896 = vld [vmem:[%s194 + $0x8] sm:$0xf0]
        %v897 = vld [vmem:[%s194 + $0x10] sm:$0xf0]
        %v898 = vld [vmem:[%s194 + $0x18] sm:$0xf0]
        %v899 = vld [vmem:[%s194 + $0x20] sm:$0xf0]
        %v900 = vld [vmem:[%s194 + $0x28] sm:$0xf0]
        %v901 = vld [vmem:[%s194 + $0x30] sm:$0xf0]
        %v902 = vld [vmem:[%s194 + $0x38] sm:$0xf0]
        %vm903 = vcmask 1047556
        %v904 = vsel %vm903, %v895, -inf
        %v905 = vrot.slane %v904, 4
        %v906 = vmax.f32 %v904, %v905
        %v907 = vrot.slane %v906, 2
        %v908 = vmax.f32 %v906, %v907
        %v909 = vrot.slane %v908, 1
        %v910 = vmax.f32 %v908, %v909
        %v911 = vsel %vm903, %v896, -inf
        %v912 = vrot.slane %v911, 4
        %v913 = vmax.f32 %v911, %v912
        %v914 = vrot.slane %v913, 2
        %v915 = vmax.f32 %v913, %v914
        %v916 = vrot.slane %v915, 1
        %v917 = vmax.f32 %v915, %v916
        %v918 = vsel %vm903, %v897, -inf
        %v919 = vrot.slane %v918, 4
        %v920 = vmax.f32 %v918, %v919
        %v921 = vrot.slane %v920, 2
        %v922 = vmax.f32 %v920, %v921
        %v923 = vrot.slane %v922, 1
        %v924 = vmax.f32 %v922, %v923
        %v925 = vsel %vm903, %v898, -inf
        %v926 = vrot.slane %v925, 4
        %v927 = vmax.f32 %v925, %v926
        %v928 = vrot.slane %v927, 2
        %v929 = vmax.f32 %v927, %v928
        %v930 = vrot.slane %v929, 1
        %v931 = vmax.f32 %v929, %v930
        %v932 = vsel %vm903, %v899, -inf
        %v933 = vrot.slane %v932, 4
        %v934 = vmax.f32 %v932, %v933
        %v935 = vrot.slane %v934, 2
        %v936 = vmax.f32 %v934, %v935
        %v937 = vrot.slane %v936, 1
        %v938 = vmax.f32 %v936, %v937
        %v939 = vsel %vm903, %v900, -inf
        %v940 = vrot.slane %v939, 4
        %v941 = vmax.f32 %v939, %v940
        %v942 = vrot.slane %v941, 2
        %v943 = vmax.f32 %v941, %v942
        %v944 = vrot.slane %v943, 1
        %v945 = vmax.f32 %v943, %v944
        %v946 = vsel %vm903, %v901, -inf
        %v947 = vrot.slane %v946, 4
        %v948 = vmax.f32 %v946, %v947
        %v949 = vrot.slane %v948, 2
        %v950 = vmax.f32 %v948, %v949
        %v951 = vrot.slane %v950, 1
        %v952 = vmax.f32 %v950, %v951
        %v953 = vsel %vm903, %v902, -inf
        %v954 = vrot.slane %v953, 4
        %v955 = vmax.f32 %v953, %v954
        %v956 = vrot.slane %v955, 2
        %v957 = vmax.f32 %v955, %v956
        %v958 = vrot.slane %v957, 1
        %v959 = vmax.f32 %v957, %v958
        %964 = vrot.lane.b32.xlu0 %v910, 112
        %v965 = vpop.permute.xlu0 %964
        %966 = vrot.lane.b32.xlu0 %v924, 112
        %v967 = vpop.permute.xlu0 %966
        %968 = vrot.lane.b32.xlu0 %v938, 112
        %v969 = vpop.permute.xlu0 %968
        %970 = vrot.lane.b32.xlu0 %v952, 112
        %v971 = vpop.permute.xlu0 %970
        %v976 = vmax.f32 %v910, %v965
        %v977 = vmax.f32 %v924, %v967
        %v978 = vmax.f32 %v938, %v969
        %v979 = vmax.f32 %v952, %v971
        %980 = vrot.lane.b32.xlu0 %v910, 96
        %v981 = vpop.permute.xlu0 %980
        %982 = vrot.lane.b32.xlu0 %v924, 96
        %v983 = vpop.permute.xlu0 %982
        %984 = vrot.lane.b32.xlu0 %v938, 96
        %v985 = vpop.permute.xlu0 %984
        %986 = vrot.lane.b32.xlu0 %v952, 96
        %v987 = vpop.permute.xlu0 %986
        %v992 = vmax.f32 %v976, %v981
        %v993 = vmax.f32 %v977, %v983
        %v994 = vmax.f32 %v978, %v985
        %v995 = vmax.f32 %v979, %v987
        %996 = vrot.lane.b32.xlu0 %v910, 80
        %v997 = vpop.permute.xlu0 %996
        %998 = vrot.lane.b32.xlu0 %v924, 80
        %v999 = vpop.permute.xlu0 %998
        %1000 = vrot.lane.b32.xlu0 %v938, 80
        %v1001 = vpop.permute.xlu0 %1000
        %1002 = vrot.lane.b32.xlu0 %v952, 80
        %v1003 = vpop.permute.xlu0 %1002
        %v1008 = vmax.f32 %v992, %v997
        %v1009 = vmax.f32 %v993, %v999
        %v1010 = vmax.f32 %v994, %v1001
        %v1011 = vmax.f32 %v995, %v1003
        %1012 = vrot.lane.b32.xlu0 %v910, 64
        %v1013 = vpop.permute.xlu0 %1012
        %1014 = vrot.lane.b32.xlu0 %v924, 64
        %v1015 = vpop.permute.xlu0 %1014
        %1016 = vrot.lane.b32.xlu0 %v938, 64
        %v1017 = vpop.permute.xlu0 %1016
        %1018 = vrot.lane.b32.xlu0 %v952, 64
        %v1019 = vpop.permute.xlu0 %1018
        %v1024 = vmax.f32 %v1008, %v1013
        %v1025 = vmax.f32 %v1009, %v1015
        %v1026 = vmax.f32 %v1010, %v1017
        %v1027 = vmax.f32 %v1011, %v1019
        %1028 = vrot.lane.b32.xlu0 %v910, 48
        %v1029 = vpop.permute.xlu0 %1028
        %1030 = vrot.lane.b32.xlu0 %v924, 48
        %v1031 = vpop.permute.xlu0 %1030
        %1032 = vrot.lane.b32.xlu0 %v938, 48
        %v1033 = vpop.permute.xlu0 %1032
        %1034 = vrot.lane.b32.xlu0 %v952, 48
        %v1035 = vpop.permute.xlu0 %1034
        %v1040 = vmax.f32 %v1024, %v1029
        %v1041 = vmax.f32 %v1025, %v1031
        %v1042 = vmax.f32 %v1026, %v1033
        %v1043 = vmax.f32 %v1027, %v1035
        %1044 = vrot.lane.b32.xlu0 %v910, 32
        %v1045 = vpop.permute.xlu0 %1044
        %1046 = vrot.lane.b32.xlu0 %v924, 32
        %v1047 = vpop.permute.xlu0 %1046
        %1048 = vrot.lane.b32.xlu0 %v938, 32
        %v1049 = vpop.permute.xlu0 %1048
        %1050 = vrot.lane.b32.xlu0 %v952, 32
        %v1051 = vpop.permute.xlu0 %1050
        %v1056 = vmax.f32 %v1040, %v1045
        %v1057 = vmax.f32 %v1041, %v1047
        %v1058 = vmax.f32 %v1042, %v1049
        %v1059 = vmax.f32 %v1043, %v1051
        %1060 = vrot.lane.b32.xlu0 %v910, 16
        %v1061 = vpop.permute.xlu0 %1060
        %1062 = vrot.lane.b32.xlu0 %v924, 16
        %v1063 = vpop.permute.xlu0 %1062
        %1064 = vrot.lane.b32.xlu0 %v938, 16
        %v1065 = vpop.permute.xlu0 %1064
        %1066 = vrot.lane.b32.xlu0 %v952, 16
        %v1067 = vpop.permute.xlu0 %1066
        %v1072 = vmax.f32 %v1056, %v1061
        %v1073 = vmax.f32 %v1057, %v1063
        %v1074 = vmax.f32 %v1058, %v1065
        %v1075 = vmax.f32 %v1059, %v1067
        %v1080 = vrot.slane %v1073, 7
        %v1081 = vsel %vm543, %v1080, %v1072
        %v1082 = vrot.slane %v1074, 6
        %v1083 = vsel %vm546, %v1082, %v1081
        %v1084 = vrot.slane %v1075, 5
        %v1085 = vsel %vm549, %v1084, %v1083
        %v1087 = vsel %vm750, %v1085, -inf
        %1088 = vmax.xlane.f32.xlu0 %v1087
        %v1089 = vpop.xlane.xlu0 %1088
        %v1090 = vsel %vm754, %v1085, -inf
        %1091 = vmax.xlane.f32.xlu0 %v1090
        %v1092 = vpop.xlane.xlu0 %1091
        %v1093 = vadd.f32 %v1089, %v1092
        %1098 = vrot.lane.b32.xlu0 %v917, 112
        %v1099 = vpop.permute.xlu0 %1098
        %1100 = vrot.lane.b32.xlu0 %v931, 112
        %v1101 = vpop.permute.xlu0 %1100
        %1102 = vrot.lane.b32.xlu0 %v945, 112
        %v1103 = vpop.permute.xlu0 %1102
        %1104 = vrot.lane.b32.xlu0 %v959, 112
        %v1105 = vpop.permute.xlu0 %1104
        %v1110 = vmax.f32 %v917, %v1099
        %v1111 = vmax.f32 %v931, %v1101
        %v1112 = vmax.f32 %v945, %v1103
        %v1113 = vmax.f32 %v959, %v1105
        %1114 = vrot.lane.b32.xlu0 %v917, 96
        %v1115 = vpop.permute.xlu0 %1114
        %1116 = vrot.lane.b32.xlu0 %v931, 96
        %v1117 = vpop.permute.xlu0 %1116
        %1118 = vrot.lane.b32.xlu0 %v945, 96
        %v1119 = vpop.permute.xlu0 %1118
        %1120 = vrot.lane.b32.xlu0 %v959, 96
        %v1121 = vpop.permute.xlu0 %1120
        %v1126 = vmax.f32 %v1110, %v1115
        %v1127 = vmax.f32 %v1111, %v1117
        %v1128 = vmax.f32 %v1112, %v1119
        %v1129 = vmax.f32 %v1113, %v1121
        %1130 = vrot.lane.b32.xlu0 %v917, 80
        %v1131 = vpop.permute.xlu0 %1130
        %1132 = vrot.lane.b32.xlu0 %v931, 80
        %v1133 = vpop.permute.xlu0 %1132
        %1134 = vrot.lane.b32.xlu0 %v945, 80
        %v1135 = vpop.permute.xlu0 %1134
        %1136 = vrot.lane.b32.xlu0 %v959, 80
        %v1137 = vpop.permute.xlu0 %1136
        %v1142 = vmax.f32 %v1126, %v1131
        %v1143 = vmax.f32 %v1127, %v1133
        %v1144 = vmax.f32 %v1128, %v1135
        %v1145 = vmax.f32 %v1129, %v1137
        %1146 = vrot.lane.b32.xlu0 %v917, 64
        %v1147 = vpop.permute.xlu0 %1146
        %1148 = vrot.lane.b32.xlu0 %v931, 64
        %v1149 = vpop.permute.xlu0 %1148
        %1150 = vrot.lane.b32.xlu0 %v945, 64
        %v1151 = vpop.permute.xlu0 %1150
        %1152 = vrot.lane.b32.xlu0 %v959, 64
        %v1153 = vpop.permute.xlu0 %1152
        %v1158 = vmax.f32 %v1142, %v1147
        %v1159 = vmax.f32 %v1143, %v1149
        %v1160 = vmax.f32 %v1144, %v1151
        %v1161 = vmax.f32 %v1145, %v1153
        %1162 = vrot.lane.b32.xlu0 %v917, 48
        %v1163 = vpop.permute.xlu0 %1162
        %1164 = vrot.lane.b32.xlu0 %v931, 48
        %v1165 = vpop.permute.xlu0 %1164
        %1166 = vrot.lane.b32.xlu0 %v945, 48
        %v1167 = vpop.permute.xlu0 %1166
        %1168 = vrot.lane.b32.xlu0 %v959, 48
        %v1169 = vpop.permute.xlu0 %1168
        %v1174 = vmax.f32 %v1158, %v1163
        %v1175 = vmax.f32 %v1159, %v1165
        %v1176 = vmax.f32 %v1160, %v1167
        %v1177 = vmax.f32 %v1161, %v1169
        %1178 = vrot.lane.b32.xlu0 %v917, 32
        %v1179 = vpop.permute.xlu0 %1178
        %1180 = vrot.lane.b32.xlu0 %v931, 32
        %v1181 = vpop.permute.xlu0 %1180
        %1182 = vrot.lane.b32.xlu0 %v945, 32
        %v1183 = vpop.permute.xlu0 %1182
        %1184 = vrot.lane.b32.xlu0 %v959, 32
        %v1185 = vpop.permute.xlu0 %1184
        %v1190 = vmax.f32 %v1174, %v1179
        %v1191 = vmax.f32 %v1175, %v1181
        %v1192 = vmax.f32 %v1176, %v1183
        %v1193 = vmax.f32 %v1177, %v1185
        %1194 = vrot.lane.b32.xlu0 %v917, 16
        %v1195 = vpop.permute.xlu0 %1194
        %1196 = vrot.lane.b32.xlu0 %v931, 16
        %v1197 = vpop.permute.xlu0 %1196
        %1198 = vrot.lane.b32.xlu0 %v945, 16
        %v1199 = vpop.permute.xlu0 %1198
        %1200 = vrot.lane.b32.xlu0 %v959, 16
        %v1201 = vpop.permute.xlu0 %1200
        %v1206 = vmax.f32 %v1190, %v1195
        %v1207 = vmax.f32 %v1191, %v1197
        %v1208 = vmax.f32 %v1192, %v1199
        %v1209 = vmax.f32 %v1193, %v1201
        %v1214 = vrot.slane %v1207, 7
        %v1215 = vsel %vm543, %v1214, %v1206
        %v1216 = vrot.slane %v1208, 6
        %v1217 = vsel %vm546, %v1216, %v1215
        %v1218 = vrot.slane %v1209, 5
        %v1219 = vsel %vm549, %v1218, %v1217
        %v1221 = vsel %vm750, %v1219, -inf
        %1222 = vmax.xlane.f32.xlu0 %v1221
        %v1223 = vpop.xlane.xlu0 %1222
        %v1224 = vadd.f32 %v1093, %v1223
        %v1225 = vsel %vm754, %v1219, -inf
        %1226 = vmax.xlane.f32.xlu0 %v1225
        %v1227 = vpop.xlane.xlu0 %1226
        %v1228 = vadd.f32 %v1224, %v1227
        %v1229 = vmul.f32 %v1228, 0.25
        %vm1230 = vcmask 7168
        %v1231 = vsel %vm1230, %v894, %v1229
        %vm1232 = vcmask 11264
        %1233 = vst.msk [vmem:[%s245] sm:$0xf] %vm1232, %v1231
        %v1234 = vld [vmem:[%s194] sm:$0x3]
        %v1235 = vld [vmem:[%s194 + $0x8] sm:$0x3]
        %v1236 = vld [vmem:[%s194 + $0x10] sm:$0x3]
        %v1237 = vld [vmem:[%s194 + $0x18] sm:$0x3]
        %v1238 = vld [vmem:[%s194 + $0x20] sm:$0x3]
        %v1239 = vld [vmem:[%s194 + $0x28] sm:$0x3]
        %v1240 = vld [vmem:[%s194 + $0x30] sm:$0x3]
        %v1241 = vld [vmem:[%s194 + $0x38] sm:$0x3]
        %vm1242 = vcmask 1041408
        %v1243 = vsel %vm1242, %v1234, -inf
        %v1244 = vrot.slane %v1243, 4
        %v1245 = vmax.f32 %v1243, %v1244
        %v1246 = vrot.slane %v1245, 2
        %v1247 = vmax.f32 %v1245, %v1246
        %v1248 = vrot.slane %v1247, 1
        %v1249 = vmax.f32 %v1247, %v1248
        %v1250 = vsel %vm1242, %v1235, -inf
        %v1251 = vrot.slane %v1250, 4
        %v1252 = vmax.f32 %v1250, %v1251
        %v1253 = vrot.slane %v1252, 2
        %v1254 = vmax.f32 %v1252, %v1253
        %v1255 = vrot.slane %v1254, 1
        %v1256 = vmax.f32 %v1254, %v1255
        %v1257 = vsel %vm1242, %v1236, -inf
        %v1258 = vrot.slane %v1257, 4
        %v1259 = vmax.f32 %v1257, %v1258
        %v1260 = vrot.slane %v1259, 2
        %v1261 = vmax.f32 %v1259, %v1260
        %v1262 = vrot.slane %v1261, 1
        %v1263 = vmax.f32 %v1261, %v1262
        %v1264 = vsel %vm1242, %v1237, -inf
        %v1265 = vrot.slane %v1264, 4
        %v1266 = vmax.f32 %v1264, %v1265
        %v1267 = vrot.slane %v1266, 2
        %v1268 = vmax.f32 %v1266, %v1267
        %v1269 = vrot.slane %v1268, 1
        %v1270 = vmax.f32 %v1268, %v1269
        %v1271 = vsel %vm1242, %v1238, -inf
        %v1272 = vrot.slane %v1271, 4
        %v1273 = vmax.f32 %v1271, %v1272
        %v1274 = vrot.slane %v1273, 2
        %v1275 = vmax.f32 %v1273, %v1274
        %v1276 = vrot.slane %v1275, 1
        %v1277 = vmax.f32 %v1275, %v1276
        %v1278 = vsel %vm1242, %v1239, -inf
        %v1279 = vrot.slane %v1278, 4
        %v1280 = vmax.f32 %v1278, %v1279
        %v1281 = vrot.slane %v1280, 2
        %v1282 = vmax.f32 %v1280, %v1281
        %v1283 = vrot.slane %v1282, 1
        %v1284 = vmax.f32 %v1282, %v1283
        %v1285 = vsel %vm1242, %v1240, -inf
        %v1286 = vrot.slane %v1285, 4
        %v1287 = vmax.f32 %v1285, %v1286
        %v1288 = vrot.slane %v1287, 2
        %v1289 = vmax.f32 %v1287, %v1288
        %v1290 = vrot.slane %v1289, 1
        %v1291 = vmax.f32 %v1289, %v1290
        %v1292 = vsel %vm1242, %v1241, -inf
        %v1293 = vrot.slane %v1292, 4
        %v1294 = vmax.f32 %v1292, %v1293
        %v1295 = vrot.slane %v1294, 2
        %v1296 = vmax.f32 %v1294, %v1295
        %v1297 = vrot.slane %v1296, 1
        %v1298 = vmax.f32 %v1296, %v1297
        %1303 = vrot.lane.b32.xlu0 %v1249, 112
        %v1304 = vpop.permute.xlu0 %1303
        %1305 = vrot.lane.b32.xlu0 %v1263, 112
        %v1306 = vpop.permute.xlu0 %1305
        %1307 = vrot.lane.b32.xlu0 %v1277, 112
        %v1308 = vpop.permute.xlu0 %1307
        %1309 = vrot.lane.b32.xlu0 %v1291, 112
        %v1310 = vpop.permute.xlu0 %1309
        %v1315 = vmax.f32 %v1249, %v1304
        %v1316 = vmax.f32 %v1263, %v1306
        %v1317 = vmax.f32 %v1277, %v1308
        %v1318 = vmax.f32 %v1291, %v1310
        %1319 = vrot.lane.b32.xlu0 %v1249, 96
        %v1320 = vpop.permute.xlu0 %1319
        %1321 = vrot.lane.b32.xlu0 %v1263, 96
        %v1322 = vpop.permute.xlu0 %1321
        %1323 = vrot.lane.b32.xlu0 %v1277, 96
        %v1324 = vpop.permute.xlu0 %1323
        %1325 = vrot.lane.b32.xlu0 %v1291, 96
        %v1326 = vpop.permute.xlu0 %1325
        %v1331 = vmax.f32 %v1315, %v1320
        %v1332 = vmax.f32 %v1316, %v1322
        %v1333 = vmax.f32 %v1317, %v1324
        %v1334 = vmax.f32 %v1318, %v1326
        %1335 = vrot.lane.b32.xlu0 %v1249, 80
        %v1336 = vpop.permute.xlu0 %1335
        %1337 = vrot.lane.b32.xlu0 %v1263, 80
        %v1338 = vpop.permute.xlu0 %1337
        %1339 = vrot.lane.b32.xlu0 %v1277, 80
        %v1340 = vpop.permute.xlu0 %1339
        %1341 = vrot.lane.b32.xlu0 %v1291, 80
        %v1342 = vpop.permute.xlu0 %1341
        %v1347 = vmax.f32 %v1331, %v1336
        %v1348 = vmax.f32 %v1332, %v1338
        %v1349 = vmax.f32 %v1333, %v1340
        %v1350 = vmax.f32 %v1334, %v1342
        %v1355 = vrot.slane %v1348, 7
        %v1356 = vsel %vm543, %v1355, %v1347
        %v1357 = vrot.slane %v1349, 6
        %v1358 = vsel %vm546, %v1357, %v1356
        %v1359 = vrot.slane %v1350, 5
        %v1360 = vsel %vm549, %v1359, %v1358
        %vm1362 = vcmask 27648
        %v1363 = vsel %vm1362, %v1360, -inf
        %1364 = vmax.xlane.f32.xlu0 %v1363
        %v1365 = vpop.xlane.xlu0 %1364
        %vm1366 = vcmask 60448
        %v1367 = vsel %vm1366, %v1360, -inf
        %1368 = vmax.xlane.f32.xlu0 %v1367
        %v1369 = vpop.xlane.xlu0 %1368
        %v1370 = vadd.f32 %v1365, %v1369
        %vm1371 = vcmask 93248
        %v1372 = vsel %vm1371, %v1360, -inf
        %1373 = vmax.xlane.f32.xlu0 %v1372
        %v1374 = vpop.xlane.xlu0 %1373
        %v1375 = vadd.f32 %v1370, %v1374
        %vm1376 = vcmask 126048
        %v1377 = vsel %vm1376, %v1360, -inf
        %1378 = vmax.xlane.f32.xlu0 %v1377
        %v1379 = vpop.xlane.xlu0 %1378
        %v1380 = vadd.f32 %v1375, %v1379
        %vm1381 = vcmask 552448
        %v1382 = vsel %vm1381, %v1360, -inf
        %1383 = vmax.xlane.f32.xlu0 %v1382
        %v1384 = vpop.xlane.xlu0 %1383
        %v1385 = vadd.f32 %v1380, %v1384
        %vm1386 = vcmask 585248
        %v1387 = vsel %vm1386, %v1360, -inf
        %1388 = vmax.xlane.f32.xlu0 %v1387
        %v1389 = vpop.xlane.xlu0 %1388
        %v1390 = vadd.f32 %v1385, %v1389
        %vm1391 = vcmask 618048
        %v1392 = vsel %vm1391, %v1360, -inf
        %1393 = vmax.xlane.f32.xlu0 %v1392
        %v1394 = vpop.xlane.xlu0 %1393
        %v1395 = vadd.f32 %v1390, %v1394
        %vm1396 = vcmask 650848
        %v1397 = vsel %vm1396, %v1360, -inf
        %1398 = vmax.xlane.f32.xlu0 %v1397
        %v1399 = vpop.xlane.xlu0 %1398
        %v1400 = vadd.f32 %v1395, %v1399
        %1405 = vrot.lane.b32.xlu0 %v1256, 112
        %v1406 = vpop.permute.xlu0 %1405
        %1407 = vrot.lane.b32.xlu0 %v1270, 112
        %v1408 = vpop.permute.xlu0 %1407
        %1409 = vrot.lane.b32.xlu0 %v1284, 112
        %v1410 = vpop.permute.xlu0 %1409
        %1411 = vrot.lane.b32.xlu0 %v1298, 112
        %v1412 = vpop.permute.xlu0 %1411
        %v1417 = vmax.f32 %v1256, %v1406
        %v1418 = vmax.f32 %v1270, %v1408
        %v1419 = vmax.f32 %v1284, %v1410
        %v1420 = vmax.f32 %v1298, %v1412
        %1421 = vrot.lane.b32.xlu0 %v1256, 96
        %v1422 = vpop.permute.xlu0 %1421
        %1423 = vrot.lane.b32.xlu0 %v1270, 96
        %v1424 = vpop.permute.xlu0 %1423
        %1425 = vrot.lane.b32.xlu0 %v1284, 96
        %v1426 = vpop.permute.xlu0 %1425
        %1427 = vrot.lane.b32.xlu0 %v1298, 96
        %v1428 = vpop.permute.xlu0 %1427
        %v1433 = vmax.f32 %v1417, %v1422
        %v1434 = vmax.f32 %v1418, %v1424
        %v1435 = vmax.f32 %v1419, %v1426
        %v1436 = vmax.f32 %v1420, %v1428
        %1437 = vrot.lane.b32.xlu0 %v1256, 80
        %v1438 = vpop.permute.xlu0 %1437
        %1439 = vrot.lane.b32.xlu0 %v1270, 80
        %v1440 = vpop.permute.xlu0 %1439
        %1441 = vrot.lane.b32.xlu0 %v1284, 80
        %v1442 = vpop.permute.xlu0 %1441
        %1443 = vrot.lane.b32.xlu0 %v1298, 80
        %v1444 = vpop.permute.xlu0 %1443
        %v1449 = vmax.f32 %v1433, %v1438
        %v1450 = vmax.f32 %v1434, %v1440
        %v1451 = vmax.f32 %v1435, %v1442
        %v1452 = vmax.f32 %v1436, %v1444
        %v1457 = vrot.slane %v1450, 7
        %v1458 = vsel %vm543, %v1457, %v1449
        %v1459 = vrot.slane %v1451, 6
        %v1460 = vsel %vm546, %v1459, %v1458
        %v1461 = vrot.slane %v1452, 5
        %v1462 = vsel %vm549, %v1461, %v1460
        %v1464 = vsel %vm1362, %v1462, -inf
        %1465 = vmax.xlane.f32.xlu0 %v1464
        %v1466 = vpop.xlane.xlu0 %1465
        %v1467 = vadd.f32 %v1400, %v1466
        %v1468 = vsel %vm1366, %v1462, -inf
        %1469 = vmax.xlane.f32.xlu0 %v1468
        %v1470 = vpop.xlane.xlu0 %1469
        %v1471 = vadd.f32 %v1467, %v1470
        %v1472 = vsel %vm1371, %v1462, -inf
        %1473 = vmax.xlane.f32.xlu0 %v1472
        %v1474 = vpop.xlane.xlu0 %1473
        %v1475 = vadd.f32 %v1471, %v1474
        %v1476 = vsel %vm1376, %v1462, -inf
        %1477 = vmax.xlane.f32.xlu0 %v1476
        %v1478 = vpop.xlane.xlu0 %1477
        %v1479 = vadd.f32 %v1475, %v1478
        %v1480 = vsel %vm1381, %v1462, -inf
        %1481 = vmax.xlane.f32.xlu0 %v1480
        %v1482 = vpop.xlane.xlu0 %1481
        %v1483 = vadd.f32 %v1479, %v1482
        %v1484 = vsel %vm1386, %v1462, -inf
        %1485 = vmax.xlane.f32.xlu0 %v1484
        %v1486 = vpop.xlane.xlu0 %1485
        %v1487 = vadd.f32 %v1483, %v1486
        %v1488 = vsel %vm1391, %v1462, -inf
        %1489 = vmax.xlane.f32.xlu0 %v1488
        %v1490 = vpop.xlane.xlu0 %1489
        %v1491 = vadd.f32 %v1487, %v1490
        %v1492 = vsel %vm1396, %v1462, -inf
        %1493 = vmax.xlane.f32.xlu0 %v1492
        %v1494 = vpop.xlane.xlu0 %1493
        %v1495 = vadd.f32 %v1491, %v1494
        %v1496 = vmul.f32 %v1495, 0.0625
        %v1497 = vld [vmem:[%s194] sm:$0xc]
        %v1498 = vld [vmem:[%s194 + $0x8] sm:$0xc]
        %v1499 = vld [vmem:[%s194 + $0x10] sm:$0xc]
        %v1500 = vld [vmem:[%s194 + $0x18] sm:$0xc]
        %v1501 = vld [vmem:[%s194 + $0x20] sm:$0xc]
        %v1502 = vld [vmem:[%s194 + $0x28] sm:$0xc]
        %v1503 = vld [vmem:[%s194 + $0x30] sm:$0xc]
        %v1504 = vld [vmem:[%s194 + $0x38] sm:$0xc]
        %vm1505 = vcmask 1043458
        %v1506 = vsel %vm1505, %v1497, -inf
        %v1507 = vrot.slane %v1506, 4
        %v1508 = vmax.f32 %v1506, %v1507
        %v1509 = vrot.slane %v1508, 2
        %v1510 = vmax.f32 %v1508, %v1509
        %v1511 = vrot.slane %v1510, 1
        %v1512 = vmax.f32 %v1510, %v1511
        %v1513 = vsel %vm1505, %v1498, -inf
        %v1514 = vrot.slane %v1513, 4
        %v1515 = vmax.f32 %v1513, %v1514
        %v1516 = vrot.slane %v1515, 2
        %v1517 = vmax.f32 %v1515, %v1516
        %v1518 = vrot.slane %v1517, 1
        %v1519 = vmax.f32 %v1517, %v1518
        %v1520 = vsel %vm1505, %v1499, -inf
        %v1521 = vrot.slane %v1520, 4
        %v1522 = vmax.f32 %v1520, %v1521
        %v1523 = vrot.slane %v1522, 2
        %v1524 = vmax.f32 %v1522, %v1523
        %v1525 = vrot.slane %v1524, 1
        %v1526 = vmax.f32 %v1524, %v1525
        %v1527 = vsel %vm1505, %v1500, -inf
        %v1528 = vrot.slane %v1527, 4
        %v1529 = vmax.f32 %v1527, %v1528
        %v1530 = vrot.slane %v1529, 2
        %v1531 = vmax.f32 %v1529, %v1530
        %v1532 = vrot.slane %v1531, 1
        %v1533 = vmax.f32 %v1531, %v1532
        %v1534 = vsel %vm1505, %v1501, -inf
        %v1535 = vrot.slane %v1534, 4
        %v1536 = vmax.f32 %v1534, %v1535
        %v1537 = vrot.slane %v1536, 2
        %v1538 = vmax.f32 %v1536, %v1537
        %v1539 = vrot.slane %v1538, 1
        %v1540 = vmax.f32 %v1538, %v1539
        %v1541 = vsel %vm1505, %v1502, -inf
        %v1542 = vrot.slane %v1541, 4
        %v1543 = vmax.f32 %v1541, %v1542
        %v1544 = vrot.slane %v1543, 2
        %v1545 = vmax.f32 %v1543, %v1544
        %v1546 = vrot.slane %v1545, 1
        %v1547 = vmax.f32 %v1545, %v1546
        %v1548 = vsel %vm1505, %v1503, -inf
        %v1549 = vrot.slane %v1548, 4
        %v1550 = vmax.f32 %v1548, %v1549
        %v1551 = vrot.slane %v1550, 2
        %v1552 = vmax.f32 %v1550, %v1551
        %v1553 = vrot.slane %v1552, 1
        %v1554 = vmax.f32 %v1552, %v1553
        %v1555 = vsel %vm1505, %v1504, -inf
        %v1556 = vrot.slane %v1555, 4
        %v1557 = vmax.f32 %v1555, %v1556
        %v1558 = vrot.slane %v1557, 2
        %v1559 = vmax.f32 %v1557, %v1558
        %v1560 = vrot.slane %v1559, 1
        %v1561 = vmax.f32 %v1559, %v1560
        %1566 = vrot.lane.b32.xlu0 %v1512, 112
        %v1567 = vpop.permute.xlu0 %1566
        %1568 = vrot.lane.b32.xlu0 %v1526, 112
        %v1569 = vpop.permute.xlu0 %1568
        %1570 = vrot.lane.b32.xlu0 %v1540, 112
        %v1571 = vpop.permute.xlu0 %1570
        %1572 = vrot.lane.b32.xlu0 %v1554, 112
        %v1573 = vpop.permute.xlu0 %1572
        %v1578 = vmax.f32 %v1512, %v1567
        %v1579 = vmax.f32 %v1526, %v1569
        %v1580 = vmax.f32 %v1540, %v1571
        %v1581 = vmax.f32 %v1554, %v1573
        %1582 = vrot.lane.b32.xlu0 %v1512, 96
        %v1583 = vpop.permute.xlu0 %1582
        %1584 = vrot.lane.b32.xlu0 %v1526, 96
        %v1585 = vpop.permute.xlu0 %1584
        %1586 = vrot.lane.b32.xlu0 %v1540, 96
        %v1587 = vpop.permute.xlu0 %1586
        %1588 = vrot.lane.b32.xlu0 %v1554, 96
        %v1589 = vpop.permute.xlu0 %1588
        %v1594 = vmax.f32 %v1578, %v1583
        %v1595 = vmax.f32 %v1579, %v1585
        %v1596 = vmax.f32 %v1580, %v1587
        %v1597 = vmax.f32 %v1581, %v1589
        %1598 = vrot.lane.b32.xlu0 %v1512, 80
        %v1599 = vpop.permute.xlu0 %1598
        %1600 = vrot.lane.b32.xlu0 %v1526, 80
        %v1601 = vpop.permute.xlu0 %1600
        %1602 = vrot.lane.b32.xlu0 %v1540, 80
        %v1603 = vpop.permute.xlu0 %1602
        %1604 = vrot.lane.b32.xlu0 %v1554, 80
        %v1605 = vpop.permute.xlu0 %1604
        %v1610 = vmax.f32 %v1594, %v1599
        %v1611 = vmax.f32 %v1595, %v1601
        %v1612 = vmax.f32 %v1596, %v1603
        %v1613 = vmax.f32 %v1597, %v1605
        %v1618 = vrot.slane %v1611, 7
        %v1619 = vsel %vm543, %v1618, %v1610
        %v1620 = vrot.slane %v1612, 6
        %v1621 = vsel %vm546, %v1620, %v1619
        %v1622 = vrot.slane %v1613, 5
        %v1623 = vsel %vm549, %v1622, %v1621
        %v1625 = vsel %vm1362, %v1623, -inf
        %1626 = vmax.xlane.f32.xlu0 %v1625
        %v1627 = vpop.xlane.xlu0 %1626
        %v1628 = vsel %vm1366, %v1623, -inf
        %1629 = vmax.xlane.f32.xlu0 %v1628
        %v1630 = vpop.xlane.xlu0 %1629
        %v1631 = vadd.f32 %v1627, %v1630
        %v1632 = vsel %vm1371, %v1623, -inf
        %1633 = vmax.xlane.f32.xlu0 %v1632
        %v1634 = vpop.xlane.xlu0 %1633
        %v1635 = vadd.f32 %v1631, %v1634
        %v1636 = vsel %vm1376, %v1623, -inf
        %1637 = vmax.xlane.f32.xlu0 %v1636
        %v1638 = vpop.xlane.xlu0 %1637
        %v1639 = vadd.f32 %v1635, %v1638
        %v1640 = vsel %vm1381, %v1623, -inf
        %1641 = vmax.xlane.f32.xlu0 %v1640
        %v1642 = vpop.xlane.xlu0 %1641
        %v1643 = vadd.f32 %v1639, %v1642
        %v1644 = vsel %vm1386, %v1623, -inf
        %1645 = vmax.xlane.f32.xlu0 %v1644
        %v1646 = vpop.xlane.xlu0 %1645
        %v1647 = vadd.f32 %v1643, %v1646
        %v1648 = vsel %vm1391, %v1623, -inf
        %1649 = vmax.xlane.f32.xlu0 %v1648
        %v1650 = vpop.xlane.xlu0 %1649
        %v1651 = vadd.f32 %v1647, %v1650
        %v1652 = vsel %vm1396, %v1623, -inf
        %1653 = vmax.xlane.f32.xlu0 %v1652
        %v1654 = vpop.xlane.xlu0 %1653
        %v1655 = vadd.f32 %v1651, %v1654
        %1660 = vrot.lane.b32.xlu0 %v1519, 112
        %v1661 = vpop.permute.xlu0 %1660
        %1662 = vrot.lane.b32.xlu0 %v1533, 112
        %v1663 = vpop.permute.xlu0 %1662
        %1664 = vrot.lane.b32.xlu0 %v1547, 112
        %v1665 = vpop.permute.xlu0 %1664
        %1666 = vrot.lane.b32.xlu0 %v1561, 112
        %v1667 = vpop.permute.xlu0 %1666
        %v1672 = vmax.f32 %v1519, %v1661
        %v1673 = vmax.f32 %v1533, %v1663
        %v1674 = vmax.f32 %v1547, %v1665
        %v1675 = vmax.f32 %v1561, %v1667
        %1676 = vrot.lane.b32.xlu0 %v1519, 96
        %v1677 = vpop.permute.xlu0 %1676
        %1678 = vrot.lane.b32.xlu0 %v1533, 96
        %v1679 = vpop.permute.xlu0 %1678
        %1680 = vrot.lane.b32.xlu0 %v1547, 96
        %v1681 = vpop.permute.xlu0 %1680
        %1682 = vrot.lane.b32.xlu0 %v1561, 96
        %v1683 = vpop.permute.xlu0 %1682
        %v1688 = vmax.f32 %v1672, %v1677
        %v1689 = vmax.f32 %v1673, %v1679
        %v1690 = vmax.f32 %v1674, %v1681
        %v1691 = vmax.f32 %v1675, %v1683
        %1692 = vrot.lane.b32.xlu0 %v1519, 80
        %v1693 = vpop.permute.xlu0 %1692
        %1694 = vrot.lane.b32.xlu0 %v1533, 80
        %v1695 = vpop.permute.xlu0 %1694
        %1696 = vrot.lane.b32.xlu0 %v1547, 80
        %v1697 = vpop.permute.xlu0 %1696
        %1698 = vrot.lane.b32.xlu0 %v1561, 80
        %v1699 = vpop.permute.xlu0 %1698
        %v1704 = vmax.f32 %v1688, %v1693
        %v1705 = vmax.f32 %v1689, %v1695
        %v1706 = vmax.f32 %v1690, %v1697
        %v1707 = vmax.f32 %v1691, %v1699
        %v1712 = vrot.slane %v1705, 7
        %v1713 = vsel %vm543, %v1712, %v1704
        %v1714 = vrot.slane %v1706, 6
        %v1715 = vsel %vm546, %v1714, %v1713
        %v1716 = vrot.slane %v1707, 5
        %v1717 = vsel %vm549, %v1716, %v1715
        %v1719 = vsel %vm1362, %v1717, -inf
        %1720 = vmax.xlane.f32.xlu0 %v1719
        %v1721 = vpop.xlane.xlu0 %1720
        %v1722 = vadd.f32 %v1655, %v1721
        %v1723 = vsel %vm1366, %v1717, -inf
        %1724 = vmax.xlane.f32.xlu0 %v1723
        %v1725 = vpop.xlane.xlu0 %1724
        %v1726 = vadd.f32 %v1722, %v1725
        %v1727 = vsel %vm1371, %v1717, -inf
        %1728 = vmax.xlane.f32.xlu0 %v1727
        %v1729 = vpop.xlane.xlu0 %1728
        %v1730 = vadd.f32 %v1726, %v1729
        %v1731 = vsel %vm1376, %v1717, -inf
        %1732 = vmax.xlane.f32.xlu0 %v1731
        %v1733 = vpop.xlane.xlu0 %1732
        %v1734 = vadd.f32 %v1730, %v1733
        %v1735 = vsel %vm1381, %v1717, -inf
        %1736 = vmax.xlane.f32.xlu0 %v1735
        %v1737 = vpop.xlane.xlu0 %1736
        %v1738 = vadd.f32 %v1734, %v1737
        %v1739 = vsel %vm1386, %v1717, -inf
        %1740 = vmax.xlane.f32.xlu0 %v1739
        %v1741 = vpop.xlane.xlu0 %1740
        %v1742 = vadd.f32 %v1738, %v1741
        %v1743 = vsel %vm1391, %v1717, -inf
        %1744 = vmax.xlane.f32.xlu0 %v1743
        %v1745 = vpop.xlane.xlu0 %1744
        %v1746 = vadd.f32 %v1742, %v1745
        %v1747 = vsel %vm1396, %v1717, -inf
        %1748 = vmax.xlane.f32.xlu0 %v1747
        %v1749 = vpop.xlane.xlu0 %1748
        %v1750 = vadd.f32 %v1746, %v1749
        %v1751 = vmul.f32 %v1750, 0.0625
        %v1752 = vld [vmem:[%s194] sm:$0x30]
        %v1753 = vld [vmem:[%s194 + $0x8] sm:$0x30]
        %v1754 = vld [vmem:[%s194 + $0x10] sm:$0x30]
        %v1755 = vld [vmem:[%s194 + $0x18] sm:$0x30]
        %v1756 = vld [vmem:[%s194 + $0x20] sm:$0x30]
        %v1757 = vld [vmem:[%s194 + $0x28] sm:$0x30]
        %v1758 = vld [vmem:[%s194 + $0x30] sm:$0x30]
        %v1759 = vld [vmem:[%s194 + $0x38] sm:$0x30]
        %vm1760 = vcmask 1045508
        %v1761 = vsel %vm1760, %v1752, -inf
        %v1762 = vrot.slane %v1761, 4
        %v1763 = vmax.f32 %v1761, %v1762
        %v1764 = vrot.slane %v1763, 2
        %v1765 = vmax.f32 %v1763, %v1764
        %v1766 = vrot.slane %v1765, 1
        %v1767 = vmax.f32 %v1765, %v1766
        %v1768 = vsel %vm1760, %v1753, -inf
        %v1769 = vrot.slane %v1768, 4
        %v1770 = vmax.f32 %v1768, %v1769
        %v1771 = vrot.slane %v1770, 2
        %v1772 = vmax.f32 %v1770, %v1771
        %v1773 = vrot.slane %v1772, 1
        %v1774 = vmax.f32 %v1772, %v1773
        %v1775 = vsel %vm1760, %v1754, -inf
        %v1776 = vrot.slane %v1775, 4
        %v1777 = vmax.f32 %v1775, %v1776
        %v1778 = vrot.slane %v1777, 2
        %v1779 = vmax.f32 %v1777, %v1778
        %v1780 = vrot.slane %v1779, 1
        %v1781 = vmax.f32 %v1779, %v1780
        %v1782 = vsel %vm1760, %v1755, -inf
        %v1783 = vrot.slane %v1782, 4
        %v1784 = vmax.f32 %v1782, %v1783
        %v1785 = vrot.slane %v1784, 2
        %v1786 = vmax.f32 %v1784, %v1785
        %v1787 = vrot.slane %v1786, 1
        %v1788 = vmax.f32 %v1786, %v1787
        %v1789 = vsel %vm1760, %v1756, -inf
        %v1790 = vrot.slane %v1789, 4
        %v1791 = vmax.f32 %v1789, %v1790
        %v1792 = vrot.slane %v1791, 2
        %v1793 = vmax.f32 %v1791, %v1792
        %v1794 = vrot.slane %v1793, 1
        %v1795 = vmax.f32 %v1793, %v1794
        %v1796 = vsel %vm1760, %v1757, -inf
        %v1797 = vrot.slane %v1796, 4
        %v1798 = vmax.f32 %v1796, %v1797
        %v1799 = vrot.slane %v1798, 2
        %v1800 = vmax.f32 %v1798, %v1799
        %v1801 = vrot.slane %v1800, 1
        %v1802 = vmax.f32 %v1800, %v1801
        %v1803 = vsel %vm1760, %v1758, -inf
        %v1804 = vrot.slane %v1803, 4
        %v1805 = vmax.f32 %v1803, %v1804
        %v1806 = vrot.slane %v1805, 2
        %v1807 = vmax.f32 %v1805, %v1806
        %v1808 = vrot.slane %v1807, 1
        %v1809 = vmax.f32 %v1807, %v1808
        %v1810 = vsel %vm1760, %v1759, -inf
        %v1811 = vrot.slane %v1810, 4
        %v1812 = vmax.f32 %v1810, %v1811
        %v1813 = vrot.slane %v1812, 2
        %v1814 = vmax.f32 %v1812, %v1813
        %v1815 = vrot.slane %v1814, 1
        %v1816 = vmax.f32 %v1814, %v1815
        %1821 = vrot.lane.b32.xlu0 %v1767, 112
        %v1822 = vpop.permute.xlu0 %1821
        %1823 = vrot.lane.b32.xlu0 %v1781, 112
        %v1824 = vpop.permute.xlu0 %1823
        %1825 = vrot.lane.b32.xlu0 %v1795, 112
        %v1826 = vpop.permute.xlu0 %1825
        %1827 = vrot.lane.b32.xlu0 %v1809, 112
        %v1828 = vpop.permute.xlu0 %1827
        %v1833 = vmax.f32 %v1767, %v1822
        %v1834 = vmax.f32 %v1781, %v1824
        %v1835 = vmax.f32 %v1795, %v1826
        %v1836 = vmax.f32 %v1809, %v1828
        %1837 = vrot.lane.b32.xlu0 %v1767, 96
        %v1838 = vpop.permute.xlu0 %1837
        %1839 = vrot.lane.b32.xlu0 %v1781, 96
        %v1840 = vpop.permute.xlu0 %1839
        %1841 = vrot.lane.b32.xlu0 %v1795, 96
        %v1842 = vpop.permute.xlu0 %1841
        %1843 = vrot.lane.b32.xlu0 %v1809, 96
        %v1844 = vpop.permute.xlu0 %1843
        %v1849 = vmax.f32 %v1833, %v1838
        %v1850 = vmax.f32 %v1834, %v1840
        %v1851 = vmax.f32 %v1835, %v1842
        %v1852 = vmax.f32 %v1836, %v1844
        %1853 = vrot.lane.b32.xlu0 %v1767, 80
        %v1854 = vpop.permute.xlu0 %1853
        %1855 = vrot.lane.b32.xlu0 %v1781, 80
        %v1856 = vpop.permute.xlu0 %1855
        %1857 = vrot.lane.b32.xlu0 %v1795, 80
        %v1858 = vpop.permute.xlu0 %1857
        %1859 = vrot.lane.b32.xlu0 %v1809, 80
        %v1860 = vpop.permute.xlu0 %1859
        %v1865 = vmax.f32 %v1849, %v1854
        %v1866 = vmax.f32 %v1850, %v1856
        %v1867 = vmax.f32 %v1851, %v1858
        %v1868 = vmax.f32 %v1852, %v1860
        %v1873 = vrot.slane %v1866, 7
        %v1874 = vsel %vm543, %v1873, %v1865
        %v1875 = vrot.slane %v1867, 6
        %v1876 = vsel %vm546, %v1875, %v1874
        %v1877 = vrot.slane %v1868, 5
        %v1878 = vsel %vm549, %v1877, %v1876
        %v1880 = vsel %vm1362, %v1878, -inf
        %1881 = vmax.xlane.f32.xlu0 %v1880
        %v1882 = vpop.xlane.xlu0 %1881
        %v1883 = vsel %vm1366, %v1878, -inf
        %1884 = vmax.xlane.f32.xlu0 %v1883
        %v1885 = vpop.xlane.xlu0 %1884
        %v1886 = vadd.f32 %v1882, %v1885
        %v1887 = vsel %vm1371, %v1878, -inf
        %1888 = vmax.xlane.f32.xlu0 %v1887
        %v1889 = vpop.xlane.xlu0 %1888
        %v1890 = vadd.f32 %v1886, %v1889
        %v1891 = vsel %vm1376, %v1878, -inf
        %1892 = vmax.xlane.f32.xlu0 %v1891
        %v1893 = vpop.xlane.xlu0 %1892
        %v1894 = vadd.f32 %v1890, %v1893
        %v1895 = vsel %vm1381, %v1878, -inf
        %1896 = vmax.xlane.f32.xlu0 %v1895
        %v1897 = vpop.xlane.xlu0 %1896
        %v1898 = vadd.f32 %v1894, %v1897
        %v1899 = vsel %vm1386, %v1878, -inf
        %1900 = vmax.xlane.f32.xlu0 %v1899
        %v1901 = vpop.xlane.xlu0 %1900
        %v1902 = vadd.f32 %v1898, %v1901
        %v1903 = vsel %vm1391, %v1878, -inf
        %1904 = vmax.xlane.f32.xlu0 %v1903
        %v1905 = vpop.xlane.xlu0 %1904
        %v1906 = vadd.f32 %v1902, %v1905
        %v1907 = vsel %vm1396, %v1878, -inf
        %1908 = vmax.xlane.f32.xlu0 %v1907
        %v1909 = vpop.xlane.xlu0 %1908
        %v1910 = vadd.f32 %v1906, %v1909
        %1915 = vrot.lane.b32.xlu0 %v1774, 112
        %v1916 = vpop.permute.xlu0 %1915
        %1917 = vrot.lane.b32.xlu0 %v1788, 112
        %v1918 = vpop.permute.xlu0 %1917
        %1919 = vrot.lane.b32.xlu0 %v1802, 112
        %v1920 = vpop.permute.xlu0 %1919
        %1921 = vrot.lane.b32.xlu0 %v1816, 112
        %v1922 = vpop.permute.xlu0 %1921
        %v1927 = vmax.f32 %v1774, %v1916
        %v1928 = vmax.f32 %v1788, %v1918
        %v1929 = vmax.f32 %v1802, %v1920
        %v1930 = vmax.f32 %v1816, %v1922
        %1931 = vrot.lane.b32.xlu0 %v1774, 96
        %v1932 = vpop.permute.xlu0 %1931
        %1933 = vrot.lane.b32.xlu0 %v1788, 96
        %v1934 = vpop.permute.xlu0 %1933
        %1935 = vrot.lane.b32.xlu0 %v1802, 96
        %v1936 = vpop.permute.xlu0 %1935
        %1937 = vrot.lane.b32.xlu0 %v1816, 96
        %v1938 = vpop.permute.xlu0 %1937
        %v1943 = vmax.f32 %v1927, %v1932
        %v1944 = vmax.f32 %v1928, %v1934
        %v1945 = vmax.f32 %v1929, %v1936
        %v1946 = vmax.f32 %v1930, %v1938
        %1947 = vrot.lane.b32.xlu0 %v1774, 80
        %v1948 = vpop.permute.xlu0 %1947
        %1949 = vrot.lane.b32.xlu0 %v1788, 80
        %v1950 = vpop.permute.xlu0 %1949
        %1951 = vrot.lane.b32.xlu0 %v1802, 80
        %v1952 = vpop.permute.xlu0 %1951
        %1953 = vrot.lane.b32.xlu0 %v1816, 80
        %v1954 = vpop.permute.xlu0 %1953
        %v1959 = vmax.f32 %v1943, %v1948
        %v1960 = vmax.f32 %v1944, %v1950
        %v1961 = vmax.f32 %v1945, %v1952
        %v1962 = vmax.f32 %v1946, %v1954
        %v1967 = vrot.slane %v1960, 7
        %v1968 = vsel %vm543, %v1967, %v1959
        %v1969 = vrot.slane %v1961, 6
        %v1970 = vsel %vm546, %v1969, %v1968
        %v1971 = vrot.slane %v1962, 5
        %v1972 = vsel %vm549, %v1971, %v1970
        %v1974 = vsel %vm1362, %v1972, -inf
        %1975 = vmax.xlane.f32.xlu0 %v1974
        %v1976 = vpop.xlane.xlu0 %1975
        %v1977 = vadd.f32 %v1910, %v1976
        %v1978 = vsel %vm1366, %v1972, -inf
        %1979 = vmax.xlane.f32.xlu0 %v1978
        %v1980 = vpop.xlane.xlu0 %1979
        %v1981 = vadd.f32 %v1977, %v1980
        %v1982 = vsel %vm1371, %v1972, -inf
        %1983 = vmax.xlane.f32.xlu0 %v1982
        %v1984 = vpop.xlane.xlu0 %1983
        %v1985 = vadd.f32 %v1981, %v1984
        %v1986 = vsel %vm1376, %v1972, -inf
        %1987 = vmax.xlane.f32.xlu0 %v1986
        %v1988 = vpop.xlane.xlu0 %1987
        %v1989 = vadd.f32 %v1985, %v1988
        %v1990 = vsel %vm1381, %v1972, -inf
        %1991 = vmax.xlane.f32.xlu0 %v1990
        %v1992 = vpop.xlane.xlu0 %1991
        %v1993 = vadd.f32 %v1989, %v1992
        %v1994 = vsel %vm1386, %v1972, -inf
        %1995 = vmax.xlane.f32.xlu0 %v1994
        %v1996 = vpop.xlane.xlu0 %1995
        %v1997 = vadd.f32 %v1993, %v1996
        %v1998 = vsel %vm1391, %v1972, -inf
        %1999 = vmax.xlane.f32.xlu0 %v1998
        %v2000 = vpop.xlane.xlu0 %1999
        %v2001 = vadd.f32 %v1997, %v2000
        %v2002 = vsel %vm1396, %v1972, -inf
        %2003 = vmax.xlane.f32.xlu0 %v2002
        %v2004 = vpop.xlane.xlu0 %2003
        %v2005 = vadd.f32 %v2001, %v2004
        %v2006 = vmul.f32 %v2005, 0.0625
        %v2007 = vld [vmem:[%s194] sm:$0xc0]
        %v2008 = vld [vmem:[%s194 + $0x8] sm:$0xc0]
        %v2009 = vld [vmem:[%s194 + $0x10] sm:$0xc0]
        %v2010 = vld [vmem:[%s194 + $0x18] sm:$0xc0]
        %v2011 = vld [vmem:[%s194 + $0x20] sm:$0xc0]
        %v2012 = vld [vmem:[%s194 + $0x28] sm:$0xc0]
        %v2013 = vld [vmem:[%s194 + $0x30] sm:$0xc0]
        %v2014 = vld [vmem:[%s194 + $0x38] sm:$0xc0]
        %vm2015 = vcmask 1047558
        %v2016 = vsel %vm2015, %v2007, -inf
        %v2017 = vrot.slane %v2016, 4
        %v2018 = vmax.f32 %v2016, %v2017
        %v2019 = vrot.slane %v2018, 2
        %v2020 = vmax.f32 %v2018, %v2019
        %v2021 = vrot.slane %v2020, 1
        %v2022 = vmax.f32 %v2020, %v2021
        %v2023 = vsel %vm2015, %v2008, -inf
        %v2024 = vrot.slane %v2023, 4
        %v2025 = vmax.f32 %v2023, %v2024
        %v2026 = vrot.slane %v2025, 2
        %v2027 = vmax.f32 %v2025, %v2026
        %v2028 = vrot.slane %v2027, 1
        %v2029 = vmax.f32 %v2027, %v2028
        %v2030 = vsel %vm2015, %v2009, -inf
        %v2031 = vrot.slane %v2030, 4
        %v2032 = vmax.f32 %v2030, %v2031
        %v2033 = vrot.slane %v2032, 2
        %v2034 = vmax.f32 %v2032, %v2033
        %v2035 = vrot.slane %v2034, 1
        %v2036 = vmax.f32 %v2034, %v2035
        %v2037 = vsel %vm2015, %v2010, -inf
        %v2038 = vrot.slane %v2037, 4
        %v2039 = vmax.f32 %v2037, %v2038
        %v2040 = vrot.slane %v2039, 2
        %v2041 = vmax.f32 %v2039, %v2040
        %v2042 = vrot.slane %v2041, 1
        %v2043 = vmax.f32 %v2041, %v2042
        %v2044 = vsel %vm2015, %v2011, -inf
        %v2045 = vrot.slane %v2044, 4
        %v2046 = vmax.f32 %v2044, %v2045
        %v2047 = vrot.slane %v2046, 2
        %v2048 = vmax.f32 %v2046, %v2047
        %v2049 = vrot.slane %v2048, 1
        %v2050 = vmax.f32 %v2048, %v2049
        %v2051 = vsel %vm2015, %v2012, -inf
        %v2052 = vrot.slane %v2051, 4
        %v2053 = vmax.f32 %v2051, %v2052
        %v2054 = vrot.slane %v2053, 2
        %v2055 = vmax.f32 %v2053, %v2054
        %v2056 = vrot.slane %v2055, 1
        %v2057 = vmax.f32 %v2055, %v2056
        %v2058 = vsel %vm2015, %v2013, -inf
        %v2059 = vrot.slane %v2058, 4
        %v2060 = vmax.f32 %v2058, %v2059
        %v2061 = vrot.slane %v2060, 2
        %v2062 = vmax.f32 %v2060, %v2061
        %v2063 = vrot.slane %v2062, 1
        %v2064 = vmax.f32 %v2062, %v2063
        %v2065 = vsel %vm2015, %v2014, -inf
        %v2066 = vrot.slane %v2065, 4
        %v2067 = vmax.f32 %v2065, %v2066
        %v2068 = vrot.slane %v2067, 2
        %v2069 = vmax.f32 %v2067, %v2068
        %v2070 = vrot.slane %v2069, 1
        %v2071 = vmax.f32 %v2069, %v2070
        %2076 = vrot.lane.b32.xlu0 %v2022, 112
        %v2077 = vpop.permute.xlu0 %2076
        %2078 = vrot.lane.b32.xlu0 %v2036, 112
        %v2079 = vpop.permute.xlu0 %2078
        %2080 = vrot.lane.b32.xlu0 %v2050, 112
        %v2081 = vpop.permute.xlu0 %2080
        %2082 = vrot.lane.b32.xlu0 %v2064, 112
        %v2083 = vpop.permute.xlu0 %2082
        %v2088 = vmax.f32 %v2022, %v2077
        %v2089 = vmax.f32 %v2036, %v2079
        %v2090 = vmax.f32 %v2050, %v2081
        %v2091 = vmax.f32 %v2064, %v2083
        %2092 = vrot.lane.b32.xlu0 %v2022, 96
        %v2093 = vpop.permute.xlu0 %2092
        %2094 = vrot.lane.b32.xlu0 %v2036, 96
        %v2095 = vpop.permute.xlu0 %2094
        %2096 = vrot.lane.b32.xlu0 %v2050, 96
        %v2097 = vpop.permute.xlu0 %2096
        %2098 = vrot.lane.b32.xlu0 %v2064, 96
        %v2099 = vpop.permute.xlu0 %2098
        %v2104 = vmax.f32 %v2088, %v2093
        %v2105 = vmax.f32 %v2089, %v2095
        %v2106 = vmax.f32 %v2090, %v2097
        %v2107 = vmax.f32 %v2091, %v2099
        %2108 = vrot.lane.b32.xlu0 %v2022, 80
        %v2109 = vpop.permute.xlu0 %2108
        %2110 = vrot.lane.b32.xlu0 %v2036, 80
        %v2111 = vpop.permute.xlu0 %2110
        %2112 = vrot.lane.b32.xlu0 %v2050, 80
        %v2113 = vpop.permute.xlu0 %2112
        %2114 = vrot.lane.b32.xlu0 %v2064, 80
        %v2115 = vpop.permute.xlu0 %2114
        %v2120 = vmax.f32 %v2104, %v2109
        %v2121 = vmax.f32 %v2105, %v2111
        %v2122 = vmax.f32 %v2106, %v2113
        %v2123 = vmax.f32 %v2107, %v2115
        %v2128 = vrot.slane %v2121, 7
        %v2129 = vsel %vm543, %v2128, %v2120
        %v2130 = vrot.slane %v2122, 6
        %v2131 = vsel %vm546, %v2130, %v2129
        %v2132 = vrot.slane %v2123, 5
        %v2133 = vsel %vm549, %v2132, %v2131
        %v2135 = vsel %vm1362, %v2133, -inf
        %2136 = vmax.xlane.f32.xlu0 %v2135
        %v2137 = vpop.xlane.xlu0 %2136
        %v2138 = vsel %vm1366, %v2133, -inf
        %2139 = vmax.xlane.f32.xlu0 %v2138
        %v2140 = vpop.xlane.xlu0 %2139
        %v2141 = vadd.f32 %v2137, %v2140
        %v2142 = vsel %vm1371, %v2133, -inf
        %2143 = vmax.xlane.f32.xlu0 %v2142
        %v2144 = vpop.xlane.xlu0 %2143
        %v2145 = vadd.f32 %v2141, %v2144
        %v2146 = vsel %vm1376, %v2133, -inf
        %2147 = vmax.xlane.f32.xlu0 %v2146
        %v2148 = vpop.xlane.xlu0 %2147
        %v2149 = vadd.f32 %v2145, %v2148
        %v2150 = vsel %vm1381, %v2133, -inf
        %2151 = vmax.xlane.f32.xlu0 %v2150
        %v2152 = vpop.xlane.xlu0 %2151
        %v2153 = vadd.f32 %v2149, %v2152
        %v2154 = vsel %vm1386, %v2133, -inf
        %2155 = vmax.xlane.f32.xlu0 %v2154
        %v2156 = vpop.xlane.xlu0 %2155
        %v2157 = vadd.f32 %v2153, %v2156
        %v2158 = vsel %vm1391, %v2133, -inf
        %2159 = vmax.xlane.f32.xlu0 %v2158
        %v2160 = vpop.xlane.xlu0 %2159
        %v2161 = vadd.f32 %v2157, %v2160
        %v2162 = vsel %vm1396, %v2133, -inf
        %2163 = vmax.xlane.f32.xlu0 %v2162
        %v2164 = vpop.xlane.xlu0 %2163
        %v2165 = vadd.f32 %v2161, %v2164
        %2170 = vrot.lane.b32.xlu0 %v2029, 112
        %v2171 = vpop.permute.xlu0 %2170
        %2172 = vrot.lane.b32.xlu0 %v2043, 112
        %v2173 = vpop.permute.xlu0 %2172
        %2174 = vrot.lane.b32.xlu0 %v2057, 112
        %v2175 = vpop.permute.xlu0 %2174
        %2176 = vrot.lane.b32.xlu0 %v2071, 112
        %v2177 = vpop.permute.xlu0 %2176
        %v2182 = vmax.f32 %v2029, %v2171
        %v2183 = vmax.f32 %v2043, %v2173
        %v2184 = vmax.f32 %v2057, %v2175
        %v2185 = vmax.f32 %v2071, %v2177
        %2186 = vrot.lane.b32.xlu0 %v2029, 96
        %v2187 = vpop.permute.xlu0 %2186
        %2188 = vrot.lane.b32.xlu0 %v2043, 96
        %v2189 = vpop.permute.xlu0 %2188
        %2190 = vrot.lane.b32.xlu0 %v2057, 96
        %v2191 = vpop.permute.xlu0 %2190
        %2192 = vrot.lane.b32.xlu0 %v2071, 96
        %v2193 = vpop.permute.xlu0 %2192
        %v2198 = vmax.f32 %v2182, %v2187
        %v2199 = vmax.f32 %v2183, %v2189
        %v2200 = vmax.f32 %v2184, %v2191
        %v2201 = vmax.f32 %v2185, %v2193
        %2202 = vrot.lane.b32.xlu0 %v2029, 80
        %v2203 = vpop.permute.xlu0 %2202
        %2204 = vrot.lane.b32.xlu0 %v2043, 80
        %v2205 = vpop.permute.xlu0 %2204
        %2206 = vrot.lane.b32.xlu0 %v2057, 80
        %v2207 = vpop.permute.xlu0 %2206
        %2208 = vrot.lane.b32.xlu0 %v2071, 80
        %v2209 = vpop.permute.xlu0 %2208
        %v2214 = vmax.f32 %v2198, %v2203
        %v2215 = vmax.f32 %v2199, %v2205
        %v2216 = vmax.f32 %v2200, %v2207
        %v2217 = vmax.f32 %v2201, %v2209
        %v2222 = vrot.slane %v2215, 7
        %v2223 = vsel %vm543, %v2222, %v2214
        %v2224 = vrot.slane %v2216, 6
        %v2225 = vsel %vm546, %v2224, %v2223
        %v2226 = vrot.slane %v2217, 5
        %v2227 = vsel %vm549, %v2226, %v2225
        %v2229 = vsel %vm1362, %v2227, -inf
        %2230 = vmax.xlane.f32.xlu0 %v2229
        %v2231 = vpop.xlane.xlu0 %2230
        %v2232 = vadd.f32 %v2165, %v2231
        %v2233 = vsel %vm1366, %v2227, -inf
        %2234 = vmax.xlane.f32.xlu0 %v2233
        %v2235 = vpop.xlane.xlu0 %2234
        %v2236 = vadd.f32 %v2232, %v2235
        %v2237 = vsel %vm1371, %v2227, -inf
        %2238 = vmax.xlane.f32.xlu0 %v2237
        %v2239 = vpop.xlane.xlu0 %2238
        %v2240 = vadd.f32 %v2236, %v2239
        %v2241 = vsel %vm1376, %v2227, -inf
        %2242 = vmax.xlane.f32.xlu0 %v2241
        %v2243 = vpop.xlane.xlu0 %2242
        %v2244 = vadd.f32 %v2240, %v2243
        %v2245 = vsel %vm1381, %v2227, -inf
        %2246 = vmax.xlane.f32.xlu0 %v2245
        %v2247 = vpop.xlane.xlu0 %2246
        %v2248 = vadd.f32 %v2244, %v2247
        %v2249 = vsel %vm1386, %v2227, -inf
        %2250 = vmax.xlane.f32.xlu0 %v2249
        %v2251 = vpop.xlane.xlu0 %2250
        %v2252 = vadd.f32 %v2248, %v2251
        %v2253 = vsel %vm1391, %v2227, -inf
        %2254 = vmax.xlane.f32.xlu0 %v2253
        %v2255 = vpop.xlane.xlu0 %2254
        %v2256 = vadd.f32 %v2252, %v2255
        %v2257 = vsel %vm1396, %v2227, -inf
        %2258 = vmax.xlane.f32.xlu0 %v2257
        %v2259 = vpop.xlane.xlu0 %2258
        %v2260 = vadd.f32 %v2256, %v2259
        %v2261 = vmul.f32 %v2260, 0.0625
        %v2262 = vsel %vm1230, %v1496, %v1751
        %vm2263 = vcmask 15360
        %v2264 = vsel %vm2263, %v2262, %v2006
        %vm2265 = vcmask 23552
        %v2266 = vsel %vm2265, %v2264, %v2261
        %2267 = vst.msk [vmem:[%s230] sm:$0xf] %vm1362, %v2266
        %p2268 = scmp.lt.s32.totalorder %s25, 1
        %s2269 = scalar_select %p2268, %s25, 1
        %p2270 = scmp.lt.s32.totalorder %s26, 0
        %s2271 = scalar_select %p2270, %s26, 0
        %s2272 = sadd.s32 %s2271, %s2269
        %s2273 = smul.addr %s2272, 4
        %s2274 = scalar_lea.vmem %s1, %s2273
        %p2275 = scmp.lt.s32.totalorder %s25, 1
        %s2276 = scalar_select %p2275, %s25, 1
        %p2277 = scmp.lt.s32.totalorder %s26, 0
        %s2278 = scalar_select %p2277, %s26, 0
        %s2279 = sadd.s32 %s2278, %s2276
        %s2280 = smul.addr %s2279, 4
        %s2281 = scalar_lea.vmem %s2, %s2280
        %s2282 = sand.u32 %s127, 1
        %s2283 = scalar_lea.sflag [#allocation4], %s2282
        %s2284 = sand.u32 %s127, 1
        %s2285 = smul.addr %s2284, 4
        %s2286 = scalar_lea.vmem [#allocation5], %s2285
        // Predicated region
        $region29: #{tpu_custom_call.1} parent=23 // pred_check
          %p2287 = pneg %p81
        $region30: #{tpu_custom_call.1} parent=23 // pred_check_branch
          %2289 = sbr.rel (%p2287) target = $region32
        $region31: #{tpu_custom_call.1} parent=23 // pred_region
          _
        $region32: #{tpu_custom_call.1} parent=23 // pred_fallthru
          _
        // Predicated region
        $region33: #{tpu_custom_call.1} parent=23 // pred_check
          %p2290 = pneg %p109
        $region34: #{tpu_custom_call.1} parent=23 // pred_check_branch
          %2292 = sbr.rel (%p2290) target = $region36
        $region35: #{tpu_custom_call.1} parent=23 // pred_region
          _
        $region36: #{tpu_custom_call.1} parent=23 // pred_fallthru
          _
        // Predicated region
        $region37: #{tpu_custom_call.1} parent=23 // pred_check
          %p2293 = pneg %p137
        $region38: #{tpu_custom_call.1} parent=23 // pred_check_branch
          %2295 = sbr.rel (%p2293) target = $region40
        $region39: #{tpu_custom_call.1} parent=23 // pred_region
          %s2297 = ssub.s32 64, 64
          %2298 = vsyncadd %s2283, %s2297
          %s2299 = sadd.s32 %s26, %s25
          %s2300 = smul.addr %s2299, 64
          %s2301 = scalar_lea.hbm %s3, %s2300
          %s2303 = sshll.u32 %s2286, 4
          %s2304 = int_to_ptr.vmem [resolvable:$true] %s2303
          %2306 = dma.vmem_to_hbm [thread:$0]  %s2304, 64, %s2301, %s2283
        $region40: #{tpu_custom_call.1} parent=23 // pred_fallthru
          _
      $region24: #{tpu_custom_call.1} parent=5 // pred_fallthru
        _
      %p2307 = scmp.le.s32.totalorder 2, %s16
      // Predicated region
      $region41: #{tpu_custom_call.1} parent=5 // pred_check
        %p2308 = pneg %p2307
      $region42: #{tpu_custom_call.1} parent=5 // pred_check_branch
        %2310 = sbr.rel (%p2308) target = $region44
      $region43: #{tpu_custom_call.1} parent=5 // pred_region
        %s2311 = ssub.s32 %s16, 2
        // Predicated region
        $region45: #{tpu_custom_call.1} parent=43 // pred_check
          %p2312 = pneg %p87
        $region46: #{tpu_custom_call.1} parent=43 // pred_check_branch
          %2314 = sbr.rel (%p2312) target = $region48
        $region47: #{tpu_custom_call.1} parent=43 // pred_region
          %p2315 = scmp.lt.s32.totalorder %s27, 1
          %s2316 = scalar_select %p2315, %s27, 1
          %p2317 = scmp.lt.s32.totalorder %s28, 0
          %s2318 = scalar_select %p2317, %s28, 0
          %s2319 = sadd.s32 %s2318, %s2316
          %s2320 = smul.addr %s2319, 4
          %s2321 = scalar_lea.vmem %s1, %s2320
        $region48: #{tpu_custom_call.1} parent=43 // pred_fallthru
          _
        // Predicated region
        $region49: #{tpu_custom_call.1} parent=43 // pred_check
          %p2322 = pneg %p115
        $region50: #{tpu_custom_call.1} parent=43 // pred_check_branch
          %2324 = sbr.rel (%p2322) target = $region52
        $region51: #{tpu_custom_call.1} parent=43 // pred_region
          %p2325 = scmp.lt.s32.totalorder %s27, 1
          %s2326 = scalar_select %p2325, %s27, 1
          %p2327 = scmp.lt.s32.totalorder %s28, 0
          %s2328 = scalar_select %p2327, %s28, 0
          %s2329 = sadd.s32 %s2328, %s2326
          %s2330 = smul.addr %s2329, 4
          %s2331 = scalar_lea.vmem %s2, %s2330
        $region52: #{tpu_custom_call.1} parent=43 // pred_fallthru
          _
        // Predicated region
        $region53: #{tpu_custom_call.1} parent=43 // pred_check
          %p2332 = pneg %p143
        $region54: #{tpu_custom_call.1} parent=43 // pred_check_branch
          %2334 = sbr.rel (%p2332) target = $region56
        $region55: #{tpu_custom_call.1} parent=43 // pred_region
          %s2335 = sand.u32 %s128, 1
          %s2336 = scalar_lea.sflag [#allocation4], %s2335
          %s2337 = sand.u32 %s128, 1
          %s2338 = smul.addr %s2337, 4
          %s2339 = scalar_lea.vmem [#allocation5], %s2338
          %2340 = dma.done %s2336, 64
        $region56: #{tpu_custom_call.1} parent=43 // pred_fallthru
          _
      $region44: #{tpu_custom_call.1} parent=5 // pred_fallthru
        _
    $region6: #{tpu_custom_call.1} parent=1 // loop_footer
      %s20 = sadd.s32 1, %s16
    $region7: #{tpu_custom_call.1} parent=1 // loop_footer_branch
      %15 = sbr.rel target = $region3
    $region8: #{tpu_custom_call.1} parent=1 // loop_exit
      _
    %2341 = vsyncpa [#allocation3], 1
    %s2342 = scalar_lea.sflag [#allocation3], 1
    %2343 = vsyncpa %s2342, 1
    %2344 = vsyncpa [#allocation4], 1
    %s2345 = scalar_lea.sflag [#allocation4], 1
    %2346 = vsyncpa %s2345, 1

</llo_original>
